<compile_context>
chip_gen: v7x
topology: tpu7x:2x2x1
jax: 0.10.0
libtpu: 0.0.40
codegen_flags: <defaults>
</compile_context>

<pallas_src>
import numpy as np
import jax
import jax.numpy as jnp
from jax.experimental import pallas as pl
from jax.experimental.pallas import tpu as pltpu


def _make_rnn_kernel(B, Bp, T, H, Hp, Din):
    def kernel(seq_ref, x_ref, wih_ref, whh_ref, bias_ref, h0_ref,
               out_ref, pre_ref, y_ref):
        # ---- phase 1 (parallel, off the serial path): input projection for all
        # time steps in one MXU matmul, fused in-kernel (no HBM round trip). ----
        pre_ref[...] = (
            jnp.dot(x_ref[...], wih_ref[...], preferred_element_type=jnp.float32)
            + bias_ref[...]
        )

        # ---- phase 2: serial recurrence. Hidden state lives in vregs; only the
        # hidden->hidden matmul sits on the serial dependency chain. ----
        whh = whh_ref[...]          # (Hp, Hp) hoisted, reused every step
        seq = seq_ref[...]          # (Bp, 1) int32 lengths (0 for padded rows)
        h = h0_ref[...]             # (Bp, Hp) f32

        # T is small and static -> fully unrolled loop, static slice indices.
        for t in range(T):
            pre = pre_ref[pl.ds(t * Bp, Bp), :] + jnp.dot(
                h, whh, preferred_element_type=jnp.float32)
            h_new = jnp.tanh(pre)
            mask = t < seq                          # (Bp, 1) bool
            # Full (8,128) lane+sublane dense tile store (B padded to Bp=8).
            y_ref[t] = jnp.where(mask, h_new, 0.0)
            h = jnp.where(mask, h_new, h)

        # ---- finalize: repack time-major padded results to batch-major (B,T,H)
        # inside the kernel so the HBM write-back is exact-size (no wrapper-side
        # transpose/slice round trip, no lane-padding write amplification). ----
        for t in range(T):
            out_ref[:, t, :] = y_ref[t, :B, :H]

    return kernel


def recurrent_block_forward(x, seq_len, w_ih, w_hh, b_ih, b_hh, h0, max_len=None):
    """x: (B, T, Din) batch-first; seq_len: (B,) int. Returns (B, max(seq_len), H).

    Note: under jit with traced seq_len, pass max_len explicitly (avoids host sync).
    """
    B, T, Din = x.shape
    H = w_hh.shape[0]
    Hp = ((H + 127) // 128) * 128      # pad hidden dim to lane width (128)
    Bp = ((B + 7) // 8) * 8            # pad batch dim to f32 sublane tile (8)

    f32 = jnp.float32
    x = jnp.asarray(x, f32)
    seq = jnp.asarray(seq_len, jnp.int32)

    # Zero-padded parameters / state (padded lanes & rows stay exactly 0).
    wihT = jnp.zeros((Din, Hp), f32).at[:, :H].set(jnp.asarray(w_ih, f32).T)
    whhT = jnp.zeros((Hp, Hp), f32).at[:H, :H].set(jnp.asarray(w_hh, f32).T)
    bias = jnp.zeros((1, Hp), f32).at[:, :H].set(
        (jnp.asarray(b_ih, f32) + jnp.asarray(b_hh, f32))[None, :])
    h0p = jnp.zeros((Bp, Hp), f32).at[:B, :H].set(jnp.asarray(h0, f32).reshape(B, H))
    seqp = jnp.zeros((Bp, 1), jnp.int32).at[:B, 0].set(seq)   # padded rows: len 0

    # Time-major, batch-padded, flattened rows for the single projection matmul.
    x_tm = jnp.zeros((T, Bp, Din), f32).at[:, :B, :].set(jnp.transpose(x, (1, 0, 2)))
    x2d = x_tm.reshape(T * Bp, Din)

    kernel = _make_rnn_kernel(B, Bp, T, H, Hp, Din)
    out = pl.pallas_call(
        kernel,
        out_shape=jax.ShapeDtypeStruct((B, T, H), f32),
        grid=(1,),
        in_specs=[
            pl.BlockSpec((Bp, 1), lambda i: (0, 0)),          # seq lengths
            pl.BlockSpec((T * Bp, Din), lambda i: (0, 0)),    # x, time-major rows
            pl.BlockSpec((Din, Hp), lambda i: (0, 0)),        # W_ih^T
            pl.BlockSpec((Hp, Hp), lambda i: (0, 0)),         # W_hh^T
            pl.BlockSpec((1, Hp), lambda i: (0, 0)),          # b_ih + b_hh
            pl.BlockSpec((Bp, Hp), lambda i: (0, 0)),         # h0
        ],
        out_specs=pl.BlockSpec((B, T, H), lambda i: (0, 0, 0)),
        scratch_shapes=[
            pltpu.VMEM((T * Bp, Hp), f32),    # pre = x @ W_ih^T + bias
            pltpu.VMEM((T, Bp, Hp), f32),     # time-major masked hidden outputs
        ],
        compiler_params=pltpu.CompilerParams(
            dimension_semantics=("arbitrary",),       # serial recurrence
            vmem_limit_bytes=32 * 1024 * 1024),
    )(seqp, x2d, wihT, whhT, bias, h0p)

    # pad_packed_sequence returns length == max(seq_len).
    t_out = int(np.max(np.asarray(seq_len))) if max_len is None else int(max_len)
    return out[:, :t_out]


def reference_rnn(x, seq_len, w_ih, w_hh, b_ih, b_hh, h0):
    """Pure-JAX reference mirroring torch pack -> RNN(tanh) -> pad semantics."""
    B, T, Din = x.shape
    H = w_hh.shape[0]
    h = jnp.asarray(h0, jnp.float32).reshape(B, H)
    ys = []
    for t in range(T):
        h_new = jnp.tanh(x[:, t] @ w_ih.T + b_ih + h @ w_hh.T + b_hh)
        mask = (t < seq_len)[:, None]
        h = jnp.where(mask, h_new, h)
        ys.append(jnp.where(mask, h_new, 0.0))
    y = jnp.stack(ys, axis=1)
    return y[:, : int(np.max(np.asarray(seq_len)))]


if __name__ == "__main__":
    # Small shapes consistent with the module: batch=2, seq=8, in_features=4, hidden=32.
    B, T, Din, H = 2, 8, 4, 32
    key = jax.random.PRNGKey(0)
    k_x, k_wih, k_whh, k_bih, k_bhh, k_h0 = jax.random.split(key, 6)

    x = jax.random.normal(k_x, (B, T, Din), dtype=jnp.float32)
    # pack_padded_sequence (enforce_sorted=True) needs descending lengths.
    seq_len = jnp.array([8, 5], dtype=jnp.int32)

    # Deterministic parameter init, PyTorch-style uniform(-1/sqrt(H), 1/sqrt(H)).
    bound = 1.0 / np.sqrt(H)
    w_ih = jax.random.uniform(k_wih, (H, Din), minval=-bound, maxval=bound)
    w_hh = jax.random.uniform(k_whh, (H, H), minval=-bound, maxval=bound)
    b_ih = jax.random.uniform(k_bih, (H,), minval=-bound, maxval=bound)
    b_hh = jax.random.uniform(k_bhh, (H,), minval=-bound, maxval=bound)
    # init_hidden uses torch.randn -> deterministic normal here (1 layer -> (1, B, H)).
    h0 = jax.random.normal(k_h0, (1, B, H), dtype=jnp.float32)

    y = recurrent_block_forward(x, seq_len, w_ih, w_hh, b_ih, b_hh, h0)
    y = jax.block_until_ready(y)

    y_ref = reference_rnn(x, seq_len, w_ih, w_hh, b_ih, b_hh, h0)
    np.testing.assert_allclose(np.asarray(y), np.asarray(y_ref), rtol=1e-5, atol=1e-5)

    print("KERNEL_OK")
</pallas_src>

<mosaic_0001>
module attributes {stable_mosaic.version = 11 : i64} {
  func.func @kernel(%arg0: i32, %arg1: memref<8x1xi32, #tpu.memory_space<vmem>>, %arg2: memref<64x4xf32, #tpu.memory_space<vmem>>, %arg3: memref<4x128xf32, #tpu.memory_space<vmem>>, %arg4: memref<128x128xf32, #tpu.memory_space<vmem>>, %arg5: memref<1x128xf32, #tpu.memory_space<vmem>>, %arg6: memref<8x128xf32, #tpu.memory_space<vmem>>, %arg7: memref<2x8x32xf32, #tpu.memory_space<vmem>>, %arg8: memref<64x128xf32, #tpu.memory_space<vmem>>, %arg9: memref<8x8x128xf32, #tpu.memory_space<vmem>>) attributes {dimension_semantics = [#tpu.dimension_semantics<arbitrary>], iteration_bounds = array<i64: 1>, scalar_prefetch = 0 : i64, scratch_operands = 2 : i64, tpu.core_type = #tpu.core_type<tc>, window_params = [{pipeline_mode = #tpu.pipeline_mode<synchronous>, transform_indices = @transform_0, window_bounds = array<i64: 8, 1>}, {pipeline_mode = #tpu.pipeline_mode<synchronous>, transform_indices = @transform_1, window_bounds = array<i64: 64, 4>}, {pipeline_mode = #tpu.pipeline_mode<synchronous>, transform_indices = @transform_2, window_bounds = array<i64: 4, 128>}, {pipeline_mode = #tpu.pipeline_mode<synchronous>, transform_indices = @transform_3, window_bounds = array<i64: 128, 128>}, {pipeline_mode = #tpu.pipeline_mode<synchronous>, transform_indices = @transform_4, window_bounds = array<i64: 1, 128>}, {pipeline_mode = #tpu.pipeline_mode<synchronous>, transform_indices = @transform_5, window_bounds = array<i64: 8, 128>}, {pipeline_mode = #tpu.pipeline_mode<synchronous>, transform_indices = @transform_6, window_bounds = array<i64: 2, 8, 32>}]} {
    %c0 = arith.constant 0 : index
    %c0_0 = arith.constant 0 : index
    %0 = vector.load %arg2[%c0, %c0_0] : memref<64x4xf32, #tpu.memory_space<vmem>>, vector<64x4xf32>
    %c0_1 = arith.constant 0 : index
    %c0_2 = arith.constant 0 : index
    %1 = vector.load %arg3[%c0_1, %c0_2] : memref<4x128xf32, #tpu.memory_space<vmem>>, vector<4x128xf32>
    %cst = arith.constant dense<0.000000e+00> : vector<64x128xf32>
    %2 = tpu.matmul %0, %1, %cst {dimension_numbers = #tpu.dot_dimension_numbers<[1], [0], [0], [1], [0, 0, 1, 1], [], []>} : vector<64x4xf32>, vector<4x128xf32>, vector<64x128xf32> -> vector<64x128xf32>
    %c0_3 = arith.constant 0 : index
    %c0_4 = arith.constant 0 : index
    %3 = vector.load %arg5[%c0_3, %c0_4] : memref<1x128xf32, #tpu.memory_space<vmem>>, vector<1x128xf32>
    %4 = vector.broadcast %3 : vector<1x128xf32> to vector<64x128xf32>
    %5 = arith.addf %2, %4 : vector<64x128xf32>
    %c0_5 = arith.constant 0 : index
    %c0_6 = arith.constant 0 : index
    %6 = vector.load %arg8[%c0_5, %c0_6] : memref<64x128xf32, #tpu.memory_space<vmem>>, vector<64x128xf32>
    tpu.vector_store %arg8[%c0_5, %c0_6], %5 {strides = array<i32>} : memref<64x128xf32, #tpu.memory_space<vmem>>, vector<64x128xf32>,
    %c0_7 = arith.constant 0 : index
    %c0_8 = arith.constant 0 : index
    %7 = vector.load %arg4[%c0_7, %c0_8] : memref<128x128xf32, #tpu.memory_space<vmem>>, vector<128x128xf32>
    %c0_9 = arith.constant 0 : index
    %c0_10 = arith.constant 0 : index
    %8 = vector.load %arg1[%c0_9, %c0_10] : memref<8x1xi32, #tpu.memory_space<vmem>>, vector<8x1xi32>
    %c0_11 = arith.constant 0 : index
    %c0_12 = arith.constant 0 : index
    %9 = vector.load %arg6[%c0_11, %c0_12] : memref<8x128xf32, #tpu.memory_space<vmem>>, vector<8x128xf32>
    %c0_13 = arith.constant 0 : index
    %c0_14 = arith.constant 0 : index
    %10 = vector.load %arg8[%c0_13, %c0_14] : memref<64x128xf32, #tpu.memory_space<vmem>>, vector<8x128xf32>
    %cst_15 = arith.constant dense<0.000000e+00> : vector<8x128xf32>
    %11 = tpu.matmul %9, %7, %cst_15 {dimension_numbers = #tpu.dot_dimension_numbers<[1], [0], [0], [1], [0, 0, 1, 1], [], []>} : vector<8x128xf32>, vector<128x128xf32>, vector<8x128xf32> -> vector<8x128xf32>
    %12 = arith.addf %10, %11 : vector<8x128xf32>
    %13 = math.tanh %12 : vector<8x128xf32>
    %c0_i32 = arith.constant 0 : i32
    %14 = vector.broadcast %c0_i32 : i32 to vector<8x1xi32>
    %15 = arith.cmpi sgt, %8, %14 : vector<8x1xi32>
    %cst_16 = arith.constant 0.000000e+00 : f32
    %16 = vector.shape_cast %15 : vector<8x1xi1> to vector<8x1xi1>
    %17 = vector.broadcast %16 : vector<8x1xi1> to vector<8x128xi1>
    %18 = vector.broadcast %cst_16 : f32 to vector<8x128xf32>
    %19 = arith.select %17, %13, %18 : vector<8x128xi1>, vector<8x128xf32>
    %c0_17 = arith.constant 0 : index
    %c0_18 = arith.constant 0 : index
    %c0_19 = arith.constant 0 : index
    %20 = vector.load %arg9[%c0_17, %c0_18, %c0_19] : memref<8x8x128xf32, #tpu.memory_space<vmem>>, vector<1x8x128xf32>
    %21 = vector.shape_cast %20 : vector<1x8x128xf32> to vector<8x128xf32>
    %22 = vector.shape_cast %19 : vector<8x128xf32> to vector<1x8x128xf32>
    tpu.vector_store %arg9[%c0_17, %c0_18, %c0_19], %22 {strides = array<i32>} : memref<8x8x128xf32, #tpu.memory_space<vmem>>, vector<1x8x128xf32>,
    %23 = vector.shape_cast %15 : vector<8x1xi1> to vector<8x1xi1>
    %24 = vector.broadcast %23 : vector<8x1xi1> to vector<8x128xi1>
    %25 = arith.select %24, %13, %9 : vector<8x128xi1>, vector<8x128xf32>
    %c8 = arith.constant 8 : index
    %c0_20 = arith.constant 0 : index
    %26 = vector.load %arg8[%c8, %c0_20] : memref<64x128xf32, #tpu.memory_space<vmem>>, vector<8x128xf32>
    %cst_21 = arith.constant dense<0.000000e+00> : vector<8x128xf32>
    %27 = tpu.matmul %25, %7, %cst_21 {dimension_numbers = #tpu.dot_dimension_numbers<[1], [0], [0], [1], [0, 0, 1, 1], [], []>} : vector<8x128xf32>, vector<128x128xf32>, vector<8x128xf32> -> vector<8x128xf32>
    %28 = arith.addf %26, %27 : vector<8x128xf32>
    %29 = math.tanh %28 : vector<8x128xf32>
    %c1_i32 = arith.constant 1 : i32
    %30 = vector.broadcast %c1_i32 : i32 to vector<8x1xi32>
    %31 = arith.cmpi sgt, %8, %30 : vector<8x1xi32>
    %cst_22 = arith.constant 0.000000e+00 : f32
    %32 = vector.shape_cast %31 : vector<8x1xi1> to vector<8x1xi1>
    %33 = vector.broadcast %32 : vector<8x1xi1> to vector<8x128xi1>
    %34 = vector.broadcast %cst_22 : f32 to vector<8x128xf32>
    %35 = arith.select %33, %29, %34 : vector<8x128xi1>, vector<8x128xf32>
    %c1 = arith.constant 1 : index
    %c0_23 = arith.constant 0 : index
    %c0_24 = arith.constant 0 : index
    %36 = vector.load %arg9[%c1, %c0_23, %c0_24] : memref<8x8x128xf32, #tpu.memory_space<vmem>>, vector<1x8x128xf32>
    %37 = vector.shape_cast %36 : vector<1x8x128xf32> to vector<8x128xf32>
    %38 = vector.shape_cast %35 : vector<8x128xf32> to vector<1x8x128xf32>
    tpu.vector_store %arg9[%c1, %c0_23, %c0_24], %38 {strides = array<i32>} : memref<8x8x128xf32, #tpu.memory_space<vmem>>, vector<1x8x128xf32>,
    %39 = vector.shape_cast %31 : vector<8x1xi1> to vector<8x1xi1>
    %40 = vector.broadcast %39 : vector<8x1xi1> to vector<8x128xi1>
    %41 = arith.select %40, %29, %25 : vector<8x128xi1>, vector<8x128xf32>
    %c16 = arith.constant 16 : index
    %c0_25 = arith.constant 0 : index
    %42 = vector.load %arg8[%c16, %c0_25] : memref<64x128xf32, #tpu.memory_space<vmem>>, vector<8x128xf32>
    %cst_26 = arith.constant dense<0.000000e+00> : vector<8x128xf32>
    %43 = tpu.matmul %41, %7, %cst_26 {dimension_numbers = #tpu.dot_dimension_numbers<[1], [0], [0], [1], [0, 0, 1, 1], [], []>} : vector<8x128xf32>, vector<128x128xf32>, vector<8x128xf32> -> vector<8x128xf32>
    %44 = arith.addf %42, %43 : vector<8x128xf32>
    %45 = math.tanh %44 : vector<8x128xf32>
    %c2_i32 = arith.constant 2 : i32
    %46 = vector.broadcast %c2_i32 : i32 to vector<8x1xi32>
    %47 = arith.cmpi sgt, %8, %46 : vector<8x1xi32>
    %cst_27 = arith.constant 0.000000e+00 : f32
    %48 = vector.shape_cast %47 : vector<8x1xi1> to vector<8x1xi1>
    %49 = vector.broadcast %48 : vector<8x1xi1> to vector<8x128xi1>
    %50 = vector.broadcast %cst_27 : f32 to vector<8x128xf32>
    %51 = arith.select %49, %45, %50 : vector<8x128xi1>, vector<8x128xf32>
    %c2 = arith.constant 2 : index
    %c0_28 = arith.constant 0 : index
    %c0_29 = arith.constant 0 : index
    %52 = vector.load %arg9[%c2, %c0_28, %c0_29] : memref<8x8x128xf32, #tpu.memory_space<vmem>>, vector<1x8x128xf32>
    %53 = vector.shape_cast %52 : vector<1x8x128xf32> to vector<8x128xf32>
    %54 = vector.shape_cast %51 : vector<8x128xf32> to vector<1x8x128xf32>
    tpu.vector_store %arg9[%c2, %c0_28, %c0_29], %54 {strides = array<i32>} : memref<8x8x128xf32, #tpu.memory_space<vmem>>, vector<1x8x128xf32>,
    %55 = vector.shape_cast %47 : vector<8x1xi1> to vector<8x1xi1>
    %56 = vector.broadcast %55 : vector<8x1xi1> to vector<8x128xi1>
    %57 = arith.select %56, %45, %41 : vector<8x128xi1>, vector<8x128xf32>
    %c24 = arith.constant 24 : index
    %c0_30 = arith.constant 0 : index
    %58 = vector.load %arg8[%c24, %c0_30] : memref<64x128xf32, #tpu.memory_space<vmem>>, vector<8x128xf32>
    %cst_31 = arith.constant dense<0.000000e+00> : vector<8x128xf32>
    %59 = tpu.matmul %57, %7, %cst_31 {dimension_numbers = #tpu.dot_dimension_numbers<[1], [0], [0], [1], [0, 0, 1, 1], [], []>} : vector<8x128xf32>, vector<128x128xf32>, vector<8x128xf32> -> vector<8x128xf32>
    %60 = arith.addf %58, %59 : vector<8x128xf32>
    %61 = math.tanh %60 : vector<8x128xf32>
    %c3_i32 = arith.constant 3 : i32
    %62 = vector.broadcast %c3_i32 : i32 to vector<8x1xi32>
    %63 = arith.cmpi sgt, %8, %62 : vector<8x1xi32>
    %cst_32 = arith.constant 0.000000e+00 : f32
    %64 = vector.shape_cast %63 : vector<8x1xi1> to vector<8x1xi1>
    %65 = vector.broadcast %64 : vector<8x1xi1> to vector<8x128xi1>
    %66 = vector.broadcast %cst_32 : f32 to vector<8x128xf32>
    %67 = arith.select %65, %61, %66 : vector<8x128xi1>, vector<8x128xf32>
    %c3 = arith.constant 3 : index
    %c0_33 = arith.constant 0 : index
    %c0_34 = arith.constant 0 : index
    %68 = vector.load %arg9[%c3, %c0_33, %c0_34] : memref<8x8x128xf32, #tpu.memory_space<vmem>>, vector<1x8x128xf32>
    %69 = vector.shape_cast %68 : vector<1x8x128xf32> to vector<8x128xf32>
    %70 = vector.shape_cast %67 : vector<8x128xf32> to vector<1x8x128xf32>
    tpu.vector_store %arg9[%c3, %c0_33, %c0_34], %70 {strides = array<i32>} : memref<8x8x128xf32, #tpu.memory_space<vmem>>, vector<1x8x128xf32>,
    %71 = vector.shape_cast %63 : vector<8x1xi1> to vector<8x1xi1>
    %72 = vector.broadcast %71 : vector<8x1xi1> to vector<8x128xi1>
    %73 = arith.select %72, %61, %57 : vector<8x128xi1>, vector<8x128xf32>
    %c32 = arith.constant 32 : index
    %c0_35 = arith.constant 0 : index
    %74 = vector.load %arg8[%c32, %c0_35] : memref<64x128xf32, #tpu.memory_space<vmem>>, vector<8x128xf32>
    %cst_36 = arith.constant dense<0.000000e+00> : vector<8x128xf32>
    %75 = tpu.matmul %73, %7, %cst_36 {dimension_numbers = #tpu.dot_dimension_numbers<[1], [0], [0], [1], [0, 0, 1, 1], [], []>} : vector<8x128xf32>, vector<128x128xf32>, vector<8x128xf32> -> vector<8x128xf32>
    %76 = arith.addf %74, %75 : vector<8x128xf32>
    %77 = math.tanh %76 : vector<8x128xf32>
    %c4_i32 = arith.constant 4 : i32
    %78 = vector.broadcast %c4_i32 : i32 to vector<8x1xi32>
    %79 = arith.cmpi sgt, %8, %78 : vector<8x1xi32>
    %cst_37 = arith.constant 0.000000e+00 : f32
    %80 = vector.shape_cast %79 : vector<8x1xi1> to vector<8x1xi1>
    %81 = vector.broadcast %80 : vector<8x1xi1> to vector<8x128xi1>
    %82 = vector.broadcast %cst_37 : f32 to vector<8x128xf32>
    %83 = arith.select %81, %77, %82 : vector<8x128xi1>, vector<8x128xf32>
    %c4 = arith.constant 4 : index
    %c0_38 = arith.constant 0 : index
    %c0_39 = arith.constant 0 : index
    %84 = vector.load %arg9[%c4, %c0_38, %c0_39] : memref<8x8x128xf32, #tpu.memory_space<vmem>>, vector<1x8x128xf32>
    %85 = vector.shape_cast %84 : vector<1x8x128xf32> to vector<8x128xf32>
    %86 = vector.shape_cast %83 : vector<8x128xf32> to vector<1x8x128xf32>
    tpu.vector_store %arg9[%c4, %c0_38, %c0_39], %86 {strides = array<i32>} : memref<8x8x128xf32, #tpu.memory_space<vmem>>, vector<1x8x128xf32>,
    %87 = vector.shape_cast %79 : vector<8x1xi1> to vector<8x1xi1>
    %88 = vector.broadcast %87 : vector<8x1xi1> to vector<8x128xi1>
    %89 = arith.select %88, %77, %73 : vector<8x128xi1>, vector<8x128xf32>
    %c40 = arith.constant 40 : index
    %c0_40 = arith.constant 0 : index
    %90 = vector.load %arg8[%c40, %c0_40] : memref<64x128xf32, #tpu.memory_space<vmem>>, vector<8x128xf32>
    %cst_41 = arith.constant dense<0.000000e+00> : vector<8x128xf32>
    %91 = tpu.matmul %89, %7, %cst_41 {dimension_numbers = #tpu.dot_dimension_numbers<[1], [0], [0], [1], [0, 0, 1, 1], [], []>} : vector<8x128xf32>, vector<128x128xf32>, vector<8x128xf32> -> vector<8x128xf32>
    %92 = arith.addf %90, %91 : vector<8x128xf32>
    %93 = math.tanh %92 : vector<8x128xf32>
    %c5_i32 = arith.constant 5 : i32
    %94 = vector.broadcast %c5_i32 : i32 to vector<8x1xi32>
    %95 = arith.cmpi sgt, %8, %94 : vector<8x1xi32>
    %cst_42 = arith.constant 0.000000e+00 : f32
    %96 = vector.shape_cast %95 : vector<8x1xi1> to vector<8x1xi1>
    %97 = vector.broadcast %96 : vector<8x1xi1> to vector<8x128xi1>
    %98 = vector.broadcast %cst_42 : f32 to vector<8x128xf32>
    %99 = arith.select %97, %93, %98 : vector<8x128xi1>, vector<8x128xf32>
    %c5 = arith.constant 5 : index
    %c0_43 = arith.constant 0 : index
    %c0_44 = arith.constant 0 : index
    %100 = vector.load %arg9[%c5, %c0_43, %c0_44] : memref<8x8x128xf32, #tpu.memory_space<vmem>>, vector<1x8x128xf32>
    %101 = vector.shape_cast %100 : vector<1x8x128xf32> to vector<8x128xf32>
    %102 = vector.shape_cast %99 : vector<8x128xf32> to vector<1x8x128xf32>
    tpu.vector_store %arg9[%c5, %c0_43, %c0_44], %102 {strides = array<i32>} : memref<8x8x128xf32, #tpu.memory_space<vmem>>, vector<1x8x128xf32>,
    %103 = vector.shape_cast %95 : vector<8x1xi1> to vector<8x1xi1>
    %104 = vector.broadcast %103 : vector<8x1xi1> to vector<8x128xi1>
    %105 = arith.select %104, %93, %89 : vector<8x128xi1>, vector<8x128xf32>
    %c48 = arith.constant 48 : index
    %c0_45 = arith.constant 0 : index
    %106 = vector.load %arg8[%c48, %c0_45] : memref<64x128xf32, #tpu.memory_space<vmem>>, vector<8x128xf32>
    %cst_46 = arith.constant dense<0.000000e+00> : vector<8x128xf32>
    %107 = tpu.matmul %105, %7, %cst_46 {dimension_numbers = #tpu.dot_dimension_numbers<[1], [0], [0], [1], [0, 0, 1, 1], [], []>} : vector<8x128xf32>, vector<128x128xf32>, vector<8x128xf32> -> vector<8x128xf32>
    %108 = arith.addf %106, %107 : vector<8x128xf32>
    %109 = math.tanh %108 : vector<8x128xf32>
    %c6_i32 = arith.constant 6 : i32
    %110 = vector.broadcast %c6_i32 : i32 to vector<8x1xi32>
    %111 = arith.cmpi sgt, %8, %110 : vector<8x1xi32>
    %cst_47 = arith.constant 0.000000e+00 : f32
    %112 = vector.shape_cast %111 : vector<8x1xi1> to vector<8x1xi1>
    %113 = vector.broadcast %112 : vector<8x1xi1> to vector<8x128xi1>
    %114 = vector.broadcast %cst_47 : f32 to vector<8x128xf32>
    %115 = arith.select %113, %109, %114 : vector<8x128xi1>, vector<8x128xf32>
    %c6 = arith.constant 6 : index
    %c0_48 = arith.constant 0 : index
    %c0_49 = arith.constant 0 : index
    %116 = vector.load %arg9[%c6, %c0_48, %c0_49] : memref<8x8x128xf32, #tpu.memory_space<vmem>>, vector<1x8x128xf32>
    %117 = vector.shape_cast %116 : vector<1x8x128xf32> to vector<8x128xf32>
    %118 = vector.shape_cast %115 : vector<8x128xf32> to vector<1x8x128xf32>
    tpu.vector_store %arg9[%c6, %c0_48, %c0_49], %118 {strides = array<i32>} : memref<8x8x128xf32, #tpu.memory_space<vmem>>, vector<1x8x128xf32>,
    %119 = vector.shape_cast %111 : vector<8x1xi1> to vector<8x1xi1>
    %120 = vector.broadcast %119 : vector<8x1xi1> to vector<8x128xi1>
    %121 = arith.select %120, %109, %105 : vector<8x128xi1>, vector<8x128xf32>
    %c56 = arith.constant 56 : index
    %c0_50 = arith.constant 0 : index
    %122 = vector.load %arg8[%c56, %c0_50] : memref<64x128xf32, #tpu.memory_space<vmem>>, vector<8x128xf32>
    %cst_51 = arith.constant dense<0.000000e+00> : vector<8x128xf32>
    %123 = tpu.matmul %121, %7, %cst_51 {dimension_numbers = #tpu.dot_dimension_numbers<[1], [0], [0], [1], [0, 0, 1, 1], [], []>} : vector<8x128xf32>, vector<128x128xf32>, vector<8x128xf32> -> vector<8x128xf32>
    %124 = arith.addf %122, %123 : vector<8x128xf32>
    %125 = math.tanh %124 : vector<8x128xf32>
    %c7_i32 = arith.constant 7 : i32
    %126 = vector.broadcast %c7_i32 : i32 to vector<8x1xi32>
    %127 = arith.cmpi sgt, %8, %126 : vector<8x1xi32>
    %cst_52 = arith.constant 0.000000e+00 : f32
    %128 = vector.shape_cast %127 : vector<8x1xi1> to vector<8x1xi1>
    %129 = vector.broadcast %128 : vector<8x1xi1> to vector<8x128xi1>
    %130 = vector.broadcast %cst_52 : f32 to vector<8x128xf32>
    %131 = arith.select %129, %125, %130 : vector<8x128xi1>, vector<8x128xf32>
    %c7 = arith.constant 7 : index
    %c0_53 = arith.constant 0 : index
    %c0_54 = arith.constant 0 : index
    %132 = vector.load %arg9[%c7, %c0_53, %c0_54] : memref<8x8x128xf32, #tpu.memory_space<vmem>>, vector<1x8x128xf32>
    %133 = vector.shape_cast %132 : vector<1x8x128xf32> to vector<8x128xf32>
    %134 = vector.shape_cast %131 : vector<8x128xf32> to vector<1x8x128xf32>
    tpu.vector_store %arg9[%c7, %c0_53, %c0_54], %134 {strides = array<i32>} : memref<8x8x128xf32, #tpu.memory_space<vmem>>, vector<1x8x128xf32>,
    %c0_55 = arith.constant 0 : index
    %c0_56 = arith.constant 0 : index
    %c0_57 = arith.constant 0 : index
    %135 = vector.load %arg9[%c0_55, %c0_56, %c0_57] : memref<8x8x128xf32, #tpu.memory_space<vmem>>, vector<1x2x32xf32>
    %136 = vector.shape_cast %135 : vector<1x2x32xf32> to vector<2x32xf32>
    %c0_58 = arith.constant 0 : index
    %c0_59 = arith.constant 0 : index
    %c0_60 = arith.constant 0 : index
    %137 = vector.load %arg7[%c0_58, %c0_59, %c0_60] : memref<2x8x32xf32, #tpu.memory_space<vmem>>, vector<2x1x32xf32>
    %138 = vector.shape_cast %137 : vector<2x1x32xf32> to vector<2x32xf32>
    %139 = vector.shape_cast %136 : vector<2x32xf32> to vector<2x1x32xf32>
    tpu.vector_store %arg7[%c0_58, %c0_59, %c0_60], %139 {strides = array<i32>} : memref<2x8x32xf32, #tpu.memory_space<vmem>>, vector<2x1x32xf32>,
    %c1_61 = arith.constant 1 : index
    %c0_62 = arith.constant 0 : index
    %c0_63 = arith.constant 0 : index
    %140 = vector.load %arg9[%c1_61, %c0_62, %c0_63] : memref<8x8x128xf32, #tpu.memory_space<vmem>>, vector<1x2x32xf32>
    %141 = vector.shape_cast %140 : vector<1x2x32xf32> to vector<2x32xf32>
    %c0_64 = arith.constant 0 : index
    %c1_65 = arith.constant 1 : index
    %c0_66 = arith.constant 0 : index
    %142 = vector.load %arg7[%c0_64, %c1_65, %c0_66] : memref<2x8x32xf32, #tpu.memory_space<vmem>>, vector<2x1x32xf32>
    %143 = vector.shape_cast %142 : vector<2x1x32xf32> to vector<2x32xf32>
    %144 = vector.shape_cast %141 : vector<2x32xf32> to vector<2x1x32xf32>
    tpu.vector_store %arg7[%c0_64, %c1_65, %c0_66], %144 {strides = array<i32>} : memref<2x8x32xf32, #tpu.memory_space<vmem>>, vector<2x1x32xf32>,
    %c2_67 = arith.constant 2 : index
    %c0_68 = arith.constant 0 : index
    %c0_69 = arith.constant 0 : index
    %145 = vector.load %arg9[%c2_67, %c0_68, %c0_69] : memref<8x8x128xf32, #tpu.memory_space<vmem>>, vector<1x2x32xf32>
    %146 = vector.shape_cast %145 : vector<1x2x32xf32> to vector<2x32xf32>
    %c0_70 = arith.constant 0 : index
    %c2_71 = arith.constant 2 : index
    %c0_72 = arith.constant 0 : index
    %147 = vector.load %arg7[%c0_70, %c2_71, %c0_72] : memref<2x8x32xf32, #tpu.memory_space<vmem>>, vector<2x1x32xf32>
    %148 = vector.shape_cast %147 : vector<2x1x32xf32> to vector<2x32xf32>
    %149 = vector.shape_cast %146 : vector<2x32xf32> to vector<2x1x32xf32>
    tpu.vector_store %arg7[%c0_70, %c2_71, %c0_72], %149 {strides = array<i32>} : memref<2x8x32xf32, #tpu.memory_space<vmem>>, vector<2x1x32xf32>,
    %c3_73 = arith.constant 3 : index
    %c0_74 = arith.constant 0 : index
    %c0_75 = arith.constant 0 : index
    %150 = vector.load %arg9[%c3_73, %c0_74, %c0_75] : memref<8x8x128xf32, #tpu.memory_space<vmem>>, vector<1x2x32xf32>
    %151 = vector.shape_cast %150 : vector<1x2x32xf32> to vector<2x32xf32>
    %c0_76 = arith.constant 0 : index
    %c3_77 = arith.constant 3 : index
    %c0_78 = arith.constant 0 : index
    %152 = vector.load %arg7[%c0_76, %c3_77, %c0_78] : memref<2x8x32xf32, #tpu.memory_space<vmem>>, vector<2x1x32xf32>
    %153 = vector.shape_cast %152 : vector<2x1x32xf32> to vector<2x32xf32>
    %154 = vector.shape_cast %151 : vector<2x32xf32> to vector<2x1x32xf32>
    tpu.vector_store %arg7[%c0_76, %c3_77, %c0_78], %154 {strides = array<i32>} : memref<2x8x32xf32, #tpu.memory_space<vmem>>, vector<2x1x32xf32>,
    %c4_79 = arith.constant 4 : index
    %c0_80 = arith.constant 0 : index
    %c0_81 = arith.constant 0 : index
    %155 = vector.load %arg9[%c4_79, %c0_80, %c0_81] : memref<8x8x128xf32, #tpu.memory_space<vmem>>, vector<1x2x32xf32>
    %156 = vector.shape_cast %155 : vector<1x2x32xf32> to vector<2x32xf32>
    %c0_82 = arith.constant 0 : index
    %c4_83 = arith.constant 4 : index
    %c0_84 = arith.constant 0 : index
    %157 = vector.load %arg7[%c0_82, %c4_83, %c0_84] : memref<2x8x32xf32, #tpu.memory_space<vmem>>, vector<2x1x32xf32>
    %158 = vector.shape_cast %157 : vector<2x1x32xf32> to vector<2x32xf32>
    %159 = vector.shape_cast %156 : vector<2x32xf32> to vector<2x1x32xf32>
    tpu.vector_store %arg7[%c0_82, %c4_83, %c0_84], %159 {strides = array<i32>} : memref<2x8x32xf32, #tpu.memory_space<vmem>>, vector<2x1x32xf32>,
    %c5_85 = arith.constant 5 : index
    %c0_86 = arith.constant 0 : index
    %c0_87 = arith.constant 0 : index
    %160 = vector.load %arg9[%c5_85, %c0_86, %c0_87] : memref<8x8x128xf32, #tpu.memory_space<vmem>>, vector<1x2x32xf32>
    %161 = vector.shape_cast %160 : vector<1x2x32xf32> to vector<2x32xf32>
    %c0_88 = arith.constant 0 : index
    %c5_89 = arith.constant 5 : index
    %c0_90 = arith.constant 0 : index
    %162 = vector.load %arg7[%c0_88, %c5_89, %c0_90] : memref<2x8x32xf32, #tpu.memory_space<vmem>>, vector<2x1x32xf32>
    %163 = vector.shape_cast %162 : vector<2x1x32xf32> to vector<2x32xf32>
    %164 = vector.shape_cast %161 : vector<2x32xf32> to vector<2x1x32xf32>
    tpu.vector_store %arg7[%c0_88, %c5_89, %c0_90], %164 {strides = array<i32>} : memref<2x8x32xf32, #tpu.memory_space<vmem>>, vector<2x1x32xf32>,
    %c6_91 = arith.constant 6 : index
    %c0_92 = arith.constant 0 : index
    %c0_93 = arith.constant 0 : index
    %165 = vector.load %arg9[%c6_91, %c0_92, %c0_93] : memref<8x8x128xf32, #tpu.memory_space<vmem>>, vector<1x2x32xf32>
    %166 = vector.shape_cast %165 : vector<1x2x32xf32> to vector<2x32xf32>
    %c0_94 = arith.constant 0 : index
    %c6_95 = arith.constant 6 : index
    %c0_96 = arith.constant 0 : index
    %167 = vector.load %arg7[%c0_94, %c6_95, %c0_96] : memref<2x8x32xf32, #tpu.memory_space<vmem>>, vector<2x1x32xf32>
    %168 = vector.shape_cast %167 : vector<2x1x32xf32> to vector<2x32xf32>
    %169 = vector.shape_cast %166 : vector<2x32xf32> to vector<2x1x32xf32>
    tpu.vector_store %arg7[%c0_94, %c6_95, %c0_96], %169 {strides = array<i32>} : memref<2x8x32xf32, #tpu.memory_space<vmem>>, vector<2x1x32xf32>,
    %c7_97 = arith.constant 7 : index
    %c0_98 = arith.constant 0 : index
    %c0_99 = arith.constant 0 : index
    %170 = vector.load %arg9[%c7_97, %c0_98, %c0_99] : memref<8x8x128xf32, #tpu.memory_space<vmem>>, vector<1x2x32xf32>
    %171 = vector.shape_cast %170 : vector<1x2x32xf32> to vector<2x32xf32>
    %c0_100 = arith.constant 0 : index
    %c7_101 = arith.constant 7 : index
    %c0_102 = arith.constant 0 : index
    %172 = vector.load %arg7[%c0_100, %c7_101, %c0_102] : memref<2x8x32xf32, #tpu.memory_space<vmem>>, vector<2x1x32xf32>
    %173 = vector.shape_cast %172 : vector<2x1x32xf32> to vector<2x32xf32>
    %174 = vector.shape_cast %171 : vector<2x32xf32> to vector<2x1x32xf32>
    tpu.vector_store %arg7[%c0_100, %c7_101, %c0_102], %174 {strides = array<i32>} : memref<2x8x32xf32, #tpu.memory_space<vmem>>, vector<2x1x32xf32>,
    return
  }
  func.func @transform_0(%arg0: i32) -> (i32, i32) {
    %c0_i32 = arith.constant 0 : i32
    %c0_i32_0 = arith.constant 0 : i32
    %c0_i32_1 = arith.constant 0 : i32
    return %c0_i32, %c0_i32_0 : i32, i32
  }
  func.func @transform_1(%arg0: i32) -> (i32, i32) {
    %c0_i32 = arith.constant 0 : i32
    %c0_i32_0 = arith.constant 0 : i32
    %c0_i32_1 = arith.constant 0 : i32
    return %c0_i32, %c0_i32_0 : i32, i32
  }
  func.func @transform_2(%arg0: i32) -> (i32, i32) {
    %c0_i32 = arith.constant 0 : i32
    %c0_i32_0 = arith.constant 0 : i32
    %c0_i32_1 = arith.constant 0 : i32
    return %c0_i32, %c0_i32_0 : i32, i32
  }
  func.func @transform_3(%arg0: i32) -> (i32, i32) {
    %c0_i32 = arith.constant 0 : i32
    %c0_i32_0 = arith.constant 0 : i32
    %c0_i32_1 = arith.constant 0 : i32
    return %c0_i32, %c0_i32_0 : i32, i32
  }
  func.func @transform_4(%arg0: i32) -> (i32, i32) {
    %c0_i32 = arith.constant 0 : i32
    %c0_i32_0 = arith.constant 0 : i32
    %c0_i32_1 = arith.constant 0 : i32
    return %c0_i32, %c0_i32_0 : i32, i32
  }
  func.func @transform_5(%arg0: i32) -> (i32, i32) {
    %c0_i32 = arith.constant 0 : i32
    %c0_i32_0 = arith.constant 0 : i32
    %c0_i32_1 = arith.constant 0 : i32
    return %c0_i32, %c0_i32_0 : i32, i32
  }
  func.func @transform_6(%arg0: i32) -> (i32, i32, i32) {
    %c0_i32 = arith.constant 0 : i32
    %c0_i32_0 = arith.constant 0 : i32
    %c0_i32_1 = arith.constant 0 : i32
    %c0_i32_2 = arith.constant 0 : i32
    return %c0_i32, %c0_i32_0, %c0_i32_1 : i32, i32, i32
  }
}

</mosaic_0001>

<llo_original>
// kernel: tpu_custom_call.1
$region0: #{tpu_custom_call.1}
  #allocation0 [shape = 'u32[]', space=smem, size = 0x4, offset = 0x4, fixed_abs, tag = 'smem constant byte address 0x4 - core index']
  #allocation1 [shape = 'u32[144,128]{1,0:T(1,128)}', space=vmem, size = 0x12000, scoped, tag = 'internal scratch']
  #allocation2 [shape = 'f32[64,128]{1,0:T(8,128)}', space=vmem, size = 0x8000, scoped, tag = 'scratch operand']
  #allocation3 [shape = 'f32[8,8,128]{2,1,0:T(8,128)}', space=vmem, size = 0x8000, scoped, tag = 'scratch operand']
  %s0 = inlined_call_operand.vmem [shape: s32[8,1], index: 0, kind: input, shape index: {}]
  %s1 = inlined_call_operand.vmem [shape: f32[64,4], index: 1, kind: input, shape index: {}]
  %s2 = inlined_call_operand.vmem [shape: f32[4,128], index: 2, kind: input, shape index: {}]
  %s3 = inlined_call_operand.hbm [shape: f32[128,128], index: 3, kind: input, shape index: {}]
  %s4 = inlined_call_operand.vmem [shape: f32[1,128], index: 4, kind: input, shape index: {}]
  %s5 = inlined_call_operand.vmem [shape: f32[8,128], index: 5, kind: input, shape index: {}]
  %s6 = inlined_call_operand.hbm [shape: f32[2,8,32], index: 6, kind: output, shape index: {}]
  %s7 = sld [smem:[#allocation0]]
  $region38: #{tpu_custom_call.1} parent=0
    _
  %s9 = ssub.s32 1, %s7
  %s10 = scalar_select 0, %s9, %s7
  $region1: #{tpu_custom_call.1} parent=0
    #allocation4 [shape = 'u8[65536]{0}', space=vmem, size = 0x10000, scoped, tag = 'input window, operand 3, single buffered']
    #allocation5 [shape = 's32[1]{0}', space=sflag, size = 0x4, scoped, tag = 'scoped memory for tpu_custom_call.1']
    #allocation6 [shape = 's32[1]{0}', space=sflag, size = 0x4, scoped, tag = 'scoped memory for tpu_custom_call.1']
    #allocation7 [shape = 'u8[8192]{0}', space=vmem, size = 0x2000, scoped, tag = 'output window, operand 0, single buffered']
    %11 = vsyncpa [#allocation5], 0
    %12 = vsyncpa [#allocation6], 0
    // Predicated region
    $region2: #{tpu_custom_call.1} parent=1 // pred_check
      _
    $region3: #{tpu_custom_call.1} parent=1 // pred_check_branch
      %14 = sbr.rel (0) target = $region5
    $region4: #{tpu_custom_call.1} parent=1 // pred_region
      _
    $region5: #{tpu_custom_call.1} parent=1 // pred_fallthru
      _
    // Predicated region
    $region6: #{tpu_custom_call.1} parent=1 // pred_check
      _
    $region7: #{tpu_custom_call.1} parent=1 // pred_check_branch
      %16 = sbr.rel (0) target = $region9
    $region8: #{tpu_custom_call.1} parent=1 // pred_region
      _
    $region9: #{tpu_custom_call.1} parent=1 // pred_fallthru
      _
    // Predicated region
    $region10: #{tpu_custom_call.1} parent=1 // pred_check
      _
    $region11: #{tpu_custom_call.1} parent=1 // pred_check_branch
      %18 = sbr.rel (0) target = $region13
    $region12: #{tpu_custom_call.1} parent=1 // pred_region
      _
    $region13: #{tpu_custom_call.1} parent=1 // pred_fallthru
      _
    // Predicated region
    $region14: #{tpu_custom_call.1} parent=1 // pred_check
      _
    $region15: #{tpu_custom_call.1} parent=1 // pred_check_branch
      %20 = sbr.rel (0) target = $region17
    $region16: #{tpu_custom_call.1} parent=1 // pred_region
      %s22 = ssub.s32 2048, 2048
      %23 = vsyncadd [#allocation5], %s22
      %s24 = sshll.u32 [#allocation4], 4
      %s25 = int_to_ptr.vmem [resolvable:$true] %s24
      %30 = dma.hbm_to_vmem [thread:$0]  %s3, 2048, %s25, [#allocation5], 128, 128, 8
    $region17: #{tpu_custom_call.1} parent=1 // pred_fallthru
      _
    // Predicated region
    $region18: #{tpu_custom_call.1} parent=1 // pred_check
      _
    $region19: #{tpu_custom_call.1} parent=1 // pred_check_branch
      %32 = sbr.rel (0) target = $region21
    $region20: #{tpu_custom_call.1} parent=1 // pred_region
      _
    $region21: #{tpu_custom_call.1} parent=1 // pred_fallthru
      _
    // Predicated region
    $region22: #{tpu_custom_call.1} parent=1 // pred_check
      _
    $region23: #{tpu_custom_call.1} parent=1 // pred_check_branch
      %34 = sbr.rel (0) target = $region25
    $region24: #{tpu_custom_call.1} parent=1 // pred_region
      _
    $region25: #{tpu_custom_call.1} parent=1 // pred_fallthru
      _
    // Predicated region
    $region26: #{tpu_custom_call.1} parent=1 // pred_check
      _
    $region27: #{tpu_custom_call.1} parent=1 // pred_check_branch
      %36 = sbr.rel (0) target = $region29
    $region28: #{tpu_custom_call.1} parent=1 // pred_region
      %37 = dma.done [#allocation5], 2048
    $region29: #{tpu_custom_call.1} parent=1 // pred_fallthru
      _
    %v38 = vld [vmem:[%s1] sm:$0xff]
    %v39 = vld [vmem:[%s1 + $0x8] sm:$0xff]
    %v40 = vld [vmem:[%s1 + $0x10] sm:$0xff]
    %v41 = vld [vmem:[%s1 + $0x18] sm:$0xff]
    %v42 = vld [vmem:[%s1 + $0x20] sm:$0xff]
    %v43 = vld [vmem:[%s1 + $0x28] sm:$0xff]
    %v44 = vld [vmem:[%s1 + $0x30] sm:$0xff]
    %v45 = vld [vmem:[%s1 + $0x38] sm:$0xff]
    %v46 = vld [vmem:[%s2] sm:$0xf]
    %v47 = vld [vmem:[%s4] sm:$0x1]
    %v49 = vlaneseq
    %v50 = vshrl.u32 %v49, 7
    %v51 = vsub.s32 0, %v50
    %v52 = vrot.slane %v47, %v51
    %vm54 = vcmask 31744
    %v56 = vsel %vm54, %v38, 0
    %v59 = vsel %vm54, %v39, 0
    %v62 = vsel %vm54, %v40, 0
    %v65 = vsel %vm54, %v41, 0
    %v68 = vsel %vm54, %v42, 0
    %v71 = vsel %vm54, %v43, 0
    %v74 = vsel %vm54, %v44, 0
    %v77 = vsel %vm54, %v45, 0
    %vm79 = vcmask 1043456
    %v81 = vsel %vm79, %v46, 0
    %83 = vmatprep.subr.mxu0 0.0
    %84 = vmatpush1.msra.mxu0 %v81
    %85 = vmatprep.subr.mxu0 0.0
    %86 = vmatpush1.msra.mxu0 0.0
    %87 = vmatprep.subr.mxu0 0.0
    %88 = vmatpush1.msra.mxu0 0.0
    %89 = vmatprep.subr.mxu0 0.0
    %90 = vmatpush1.msra.mxu0 0.0
    %91 = vmatprep.subr.mxu0 0.0
    %92 = vmatpush1.msra.mxu0 0.0
    %93 = vmatprep.subr.mxu0 0.0
    %94 = vmatpush1.msra.mxu0 0.0
    %95 = vmatprep.subr.mxu0 0.0
    %96 = vmatpush1.msra.mxu0 0.0
    %97 = vmatprep.subr.mxu0 0.0
    %98 = vmatpush1.msra.mxu0 0.0
    %99 = vmatprep.subr.mxu0 0.0
    %100 = vmatpush1.msra.mxu0 0.0
    %101 = vmatprep.subr.mxu0 0.0
    %102 = vmatpush1.msra.mxu0 0.0
    %103 = vmatprep.subr.mxu0 0.0
    %104 = vmatpush1.msra.mxu0 0.0
    %105 = vmatprep.subr.mxu0 0.0
    %106 = vmatpush1.msra.mxu0 0.0
    %107 = vmatprep.subr.mxu0 0.0
    %108 = vmatpush1.msra.mxu0 0.0
    %109 = vmatprep.subr.mxu0 0.0
    %110 = vmatpush1.msra.mxu0 0.0
    %111 = vmatprep.subr.mxu0 0.0
    %112 = vmatpush1.msra.mxu0 0.0
    %113 = vmatprep.subr.mxu0 0.0
    %114 = vmatpush1.msra.mxu0 0.0
    %115 = vmatprep.subr.mxu0 0.0
    %116 = vmatpush1.msra.mxu0 0.0
    %117 = vmatprep.subr.mxu0 0.0
    %118 = vmatpush1.msra.mxu0 0.0
    %119 = vmatprep.subr.mxu0 0.0
    %120 = vmatpush1.msra.mxu0 0.0
    %121 = vmatprep.subr.mxu0 0.0
    %122 = vmatpush1.msra.mxu0 0.0
    %123 = vmatprep.subr.mxu0 0.0
    %124 = vmatpush1.msra.mxu0 0.0
    %125 = vmatprep.subr.mxu0 0.0
    %126 = vmatpush1.msra.mxu0 0.0
    %127 = vmatprep.subr.mxu0 0.0
    %128 = vmatpush1.msra.mxu0 0.0
    %129 = vmatprep.subr.mxu0 0.0
    %130 = vmatpush1.msra.mxu0 0.0
    %131 = vmatprep.subr.mxu0 0.0
    %132 = vmatpush1.msra.mxu0 0.0
    %133 = vmatprep.subr.mxu0 0.0
    %134 = vmatpush1.msra.mxu0 0.0
    %135 = vmatprep.subr.mxu0 0.0
    %136 = vmatpush1.msra.mxu0 0.0
    %137 = vmatprep.subr.mxu0 0.0
    %138 = vmatpush1.msra.mxu0 0.0
    %139 = vmatprep.subr.mxu0 0.0
    %140 = vmatpush1.msra.mxu0 0.0
    %141 = vmatprep.subr.mxu0 0.0
    %142 = vmatpush1.msra.mxu0 0.0
    %143 = vmatprep.subr.mxu0 0.0
    %144 = vmatpush1.msra.mxu0 0.0
    %145 = vmatprep.subr.mxu0 0.0
    %146 = vmatpush1.msra.mxu0 0.0
    %147 = vmatprep.mubr.f32.mxu0 0.0
    %148 = vmatmul.mubr.f32.gmra.mrb[0].mxu0 %v56
    %v149 = vpop.f32.mrb[0].mxu0
    %v150 = vadd.f32 %v52, %v149
    %v151 = vpop.f32.mrb[0].mxu0
    %152 = vmatprep.mubr.f32.mxu0 0.0
    %153 = vmatmul.mubr.f32.gmra.mrb[0].mxu0 %v59
    %v154 = vpop.f32.mrb[0].mxu0
    %v155 = vadd.f32 %v52, %v154
    %v156 = vpop.f32.mrb[0].mxu0
    %157 = vmatprep.mubr.f32.mxu0 0.0
    %158 = vmatmul.mubr.f32.gmra.mrb[0].mxu0 %v62
    %v159 = vpop.f32.mrb[0].mxu0
    %v160 = vadd.f32 %v52, %v159
    %v161 = vpop.f32.mrb[0].mxu0
    %162 = vmatprep.mubr.f32.mxu0 0.0
    %163 = vmatmul.mubr.f32.gmra.mrb[0].mxu0 %v65
    %v164 = vpop.f32.mrb[0].mxu0
    %v165 = vadd.f32 %v52, %v164
    %v166 = vpop.f32.mrb[0].mxu0
    %167 = vmatprep.mubr.f32.mxu0 0.0
    %168 = vmatmul.mubr.f32.gmra.mrb[0].mxu0 %v68
    %v169 = vpop.f32.mrb[0].mxu0
    %v170 = vadd.f32 %v52, %v169
    %v171 = vpop.f32.mrb[0].mxu0
    %172 = vmatprep.mubr.f32.mxu0 0.0
    %173 = vmatmul.mubr.f32.gmra.mrb[0].mxu0 %v71
    %v174 = vpop.f32.mrb[0].mxu0
    %v175 = vadd.f32 %v52, %v174
    %v176 = vpop.f32.mrb[0].mxu0
    %177 = vmatprep.mubr.f32.mxu0 0.0
    %178 = vmatmul.mubr.f32.gmra.mrb[0].mxu0 %v74
    %v179 = vpop.f32.mrb[0].mxu0
    %v180 = vadd.f32 %v52, %v179
    %v181 = vpop.f32.mrb[0].mxu0
    %182 = vmatprep.mubr.f32.mxu0 0.0
    %183 = vmatmul.mubr.f32.gmra.mrb[0].mxu0 %v77
    %v184 = vpop.f32.mrb[0].mxu0
    %v185 = vadd.f32 %v52, %v184
    %v186 = vpop.f32.mrb[0].mxu0
    %187 = vdwg.mxu0
    %188 = vst [vmem:[#allocation2] sm:$0xff] %v150
    %189 = vst [vmem:[#allocation2 + $0x8] sm:$0xff] %v155
    %190 = vst [vmem:[#allocation2 + $0x10] sm:$0xff] %v160
    %191 = vst [vmem:[#allocation2 + $0x18] sm:$0xff] %v165
    %192 = vst [vmem:[#allocation2 + $0x20] sm:$0xff] %v170
    %193 = vst [vmem:[#allocation2 + $0x28] sm:$0xff] %v175
    %194 = vst [vmem:[#allocation2 + $0x30] sm:$0xff] %v180
    %195 = vst [vmem:[#allocation2 + $0x38] sm:$0xff] %v185
    %v196 = vld [vmem:[#allocation4] sm:$0xff]
    %v197 = vld [vmem:[#allocation4 + $0x8] sm:$0xff]
    %v198 = vld [vmem:[#allocation4 + $0x10] sm:$0xff]
    %v199 = vld [vmem:[#allocation4 + $0x18] sm:$0xff]
    %v200 = vld [vmem:[#allocation4 + $0x20] sm:$0xff]
    %v201 = vld [vmem:[#allocation4 + $0x28] sm:$0xff]
    %v202 = vld [vmem:[#allocation4 + $0x30] sm:$0xff]
    %v203 = vld [vmem:[#allocation4 + $0x38] sm:$0xff]
    %v204 = vld [vmem:[#allocation4 + $0x40] sm:$0xff]
    %v205 = vld [vmem:[#allocation4 + $0x48] sm:$0xff]
    %v206 = vld [vmem:[#allocation4 + $0x50] sm:$0xff]
    %v207 = vld [vmem:[#allocation4 + $0x58] sm:$0xff]
    %v208 = vld [vmem:[#allocation4 + $0x60] sm:$0xff]
    %v209 = vld [vmem:[#allocation4 + $0x68] sm:$0xff]
    %v210 = vld [vmem:[#allocation4 + $0x70] sm:$0xff]
    %v211 = vld [vmem:[#allocation4 + $0x78] sm:$0xff]
    %v212 = vld [vmem:[%s0] sm:$0xff]
    %v213 = vld [vmem:[%s5] sm:$0xff]
    %v214 = vld [vmem:[#allocation2] sm:$0xff]
    %215 = vmatprep.subr.mxu0 0.0
    %216 = vmatpush1.msra.mxu0 %v196
    %217 = vmatprep.subr.mxu0 0.0
    %218 = vmatpush1.msra.mxu0 %v197
    %219 = vmatprep.subr.mxu0 0.0
    %220 = vmatpush1.msra.mxu0 %v198
    %221 = vmatprep.subr.mxu0 0.0
    %222 = vmatpush1.msra.mxu0 %v199
    %223 = vmatprep.subr.mxu0 0.0
    %224 = vmatpush1.msra.mxu0 %v200
    %225 = vmatprep.subr.mxu0 0.0
    %226 = vmatpush1.msra.mxu0 %v201
    %227 = vmatprep.subr.mxu0 0.0
    %228 = vmatpush1.msra.mxu0 %v202
    %229 = vmatprep.subr.mxu0 0.0
    %230 = vmatpush1.msra.mxu0 %v203
    %231 = vmatprep.subr.mxu0 0.0
    %232 = vmatpush1.msra.mxu0 %v204
    %233 = vmatprep.subr.mxu0 0.0
    %234 = vmatpush1.msra.mxu0 %v205
    %235 = vmatprep.subr.mxu0 0.0
    %236 = vmatpush1.msra.mxu0 %v206
    %237 = vmatprep.subr.mxu0 0.0
    %238 = vmatpush1.msra.mxu0 %v207
    %239 = vmatprep.subr.mxu0 0.0
    %240 = vmatpush1.msra.mxu0 %v208
    %241 = vmatprep.subr.mxu0 0.0
    %242 = vmatpush1.msra.mxu0 %v209
    %243 = vmatprep.subr.mxu0 0.0
    %244 = vmatpush1.msra.mxu0 %v210
    %245 = vmatprep.subr.mxu0 0.0
    %246 = vmatpush1.msra.mxu0 %v211
    %247 = vmatprep.subr.mxu0 0.0
    %248 = vmatpush1.msra.mxu0 0.0
    %249 = vmatprep.subr.mxu0 0.0
    %250 = vmatpush1.msra.mxu0 0.0
    %251 = vmatprep.subr.mxu0 0.0
    %252 = vmatpush1.msra.mxu0 0.0
    %253 = vmatprep.subr.mxu0 0.0
    %254 = vmatpush1.msra.mxu0 0.0
    %255 = vmatprep.subr.mxu0 0.0
    %256 = vmatpush1.msra.mxu0 0.0
    %257 = vmatprep.subr.mxu0 0.0
    %258 = vmatpush1.msra.mxu0 0.0
    %259 = vmatprep.subr.mxu0 0.0
    %260 = vmatpush1.msra.mxu0 0.0
    %261 = vmatprep.subr.mxu0 0.0
    %262 = vmatpush1.msra.mxu0 0.0
    %263 = vmatprep.subr.mxu0 0.0
    %264 = vmatpush1.msra.mxu0 0.0
    %265 = vmatprep.subr.mxu0 0.0
    %266 = vmatpush1.msra.mxu0 0.0
    %267 = vmatprep.subr.mxu0 0.0
    %268 = vmatpush1.msra.mxu0 0.0
    %269 = vmatprep.subr.mxu0 0.0
    %270 = vmatpush1.msra.mxu0 0.0
    %271 = vmatprep.subr.mxu0 0.0
    %272 = vmatpush1.msra.mxu0 0.0
    %273 = vmatprep.subr.mxu0 0.0
    %274 = vmatpush1.msra.mxu0 0.0
    %275 = vmatprep.subr.mxu0 0.0
    %276 = vmatpush1.msra.mxu0 0.0
    %277 = vmatprep.subr.mxu0 0.0
    %278 = vmatpush1.msra.mxu0 0.0
    %279 = vmatprep.mubr.f32.mxu0 0.0
    %280 = vmatmul.mubr.f32.gmra.mrb[0].mxu0 %v213
    %v281 = vpop.f32.mrb[0].mxu0
    %v282 = vadd.f32 0.0, %v281
    %v283 = vpop.f32.mrb[0].mxu0
    %284 = vdwg.mxu0
    %v285 = vadd.f32 %v214, %v282
    %v286 = vtanh.pop %v285
    %vm287 = vcmp.gt.s32.totalorder %v212, 0
    %v288 = vsel %vm287, 1, 0
    %289 = vset.pattern.permute.xlu0 0
    %290 = vperm.xlu0 %289, %v288
    %v291 = vpop.permute.xlu0 %290
    %vm292 = vcmp.eq.s32.totalorder %v291, 1
    %v293 = vsel %vm292, %v286, 0.0
    %294 = vst [vmem:[#allocation3] sm:$0xff] %v293
    %v295 = vsel %vm292, %v286, %v213
    %v296 = vld [vmem:[#allocation2 + $0x8] sm:$0xff]
    %297 = vmatprep.subr.mxu0 0.0
    %298 = vmatpush1.msra.mxu0 %v196
    %299 = vmatprep.subr.mxu0 0.0
    %300 = vmatpush1.msra.mxu0 %v197
    %301 = vmatprep.subr.mxu0 0.0
    %302 = vmatpush1.msra.mxu0 %v198
    %303 = vmatprep.subr.mxu0 0.0
    %304 = vmatpush1.msra.mxu0 %v199
    %305 = vmatprep.subr.mxu0 0.0
    %306 = vmatpush1.msra.mxu0 %v200
    %307 = vmatprep.subr.mxu0 0.0
    %308 = vmatpush1.msra.mxu0 %v201
    %309 = vmatprep.subr.mxu0 0.0
    %310 = vmatpush1.msra.mxu0 %v202
    %311 = vmatprep.subr.mxu0 0.0
    %312 = vmatpush1.msra.mxu0 %v203
    %313 = vmatprep.subr.mxu0 0.0
    %314 = vmatpush1.msra.mxu0 %v204
    %315 = vmatprep.subr.mxu0 0.0
    %316 = vmatpush1.msra.mxu0 %v205
    %317 = vmatprep.subr.mxu0 0.0
    %318 = vmatpush1.msra.mxu0 %v206
    %319 = vmatprep.subr.mxu0 0.0
    %320 = vmatpush1.msra.mxu0 %v207
    %321 = vmatprep.subr.mxu0 0.0
    %322 = vmatpush1.msra.mxu0 %v208
    %323 = vmatprep.subr.mxu0 0.0
    %324 = vmatpush1.msra.mxu0 %v209
    %325 = vmatprep.subr.mxu0 0.0
    %326 = vmatpush1.msra.mxu0 %v210
    %327 = vmatprep.subr.mxu0 0.0
    %328 = vmatpush1.msra.mxu0 %v211
    %329 = vmatprep.subr.mxu0 0.0
    %330 = vmatpush1.msra.mxu0 0.0
    %331 = vmatprep.subr.mxu0 0.0
    %332 = vmatpush1.msra.mxu0 0.0
    %333 = vmatprep.subr.mxu0 0.0
    %334 = vmatpush1.msra.mxu0 0.0
    %335 = vmatprep.subr.mxu0 0.0
    %336 = vmatpush1.msra.mxu0 0.0
    %337 = vmatprep.subr.mxu0 0.0
    %338 = vmatpush1.msra.mxu0 0.0
    %339 = vmatprep.subr.mxu0 0.0
    %340 = vmatpush1.msra.mxu0 0.0
    %341 = vmatprep.subr.mxu0 0.0
    %342 = vmatpush1.msra.mxu0 0.0
    %343 = vmatprep.subr.mxu0 0.0
    %344 = vmatpush1.msra.mxu0 0.0
    %345 = vmatprep.subr.mxu0 0.0
    %346 = vmatpush1.msra.mxu0 0.0
    %347 = vmatprep.subr.mxu0 0.0
    %348 = vmatpush1.msra.mxu0 0.0
    %349 = vmatprep.subr.mxu0 0.0
    %350 = vmatpush1.msra.mxu0 0.0
    %351 = vmatprep.subr.mxu0 0.0
    %352 = vmatpush1.msra.mxu0 0.0
    %353 = vmatprep.subr.mxu0 0.0
    %354 = vmatpush1.msra.mxu0 0.0
    %355 = vmatprep.subr.mxu0 0.0
    %356 = vmatpush1.msra.mxu0 0.0
    %357 = vmatprep.subr.mxu0 0.0
    %358 = vmatpush1.msra.mxu0 0.0
    %359 = vmatprep.subr.mxu0 0.0
    %360 = vmatpush1.msra.mxu0 0.0
    %361 = vmatprep.mubr.f32.mxu0 0.0
    %362 = vmatmul.mubr.f32.gmra.mrb[0].mxu0 %v295
    %v363 = vpop.f32.mrb[0].mxu0
    %v364 = vadd.f32 0.0, %v363
    %v365 = vpop.f32.mrb[0].mxu0
    %366 = vdwg.mxu0
    %v367 = vadd.f32 %v296, %v364
    %v368 = vtanh.pop %v367
    %vm369 = vcmp.gt.s32.totalorder %v212, 1
    %v370 = vsel %vm369, 1, 0
    %371 = vset.pattern.permute.xlu0 0
    %372 = vperm.xlu0 %371, %v370
    %v373 = vpop.permute.xlu0 %372
    %vm374 = vcmp.eq.s32.totalorder %v373, 1
    %v375 = vsel %vm374, %v368, 0.0
    %s376 = scalar_lea.vmem [#allocation3], 8
    %377 = vst [vmem:[%s376] sm:$0xff] %v375
    %v378 = vsel %vm374, %v368, %v295
    %v379 = vld [vmem:[#allocation2 + $0x10] sm:$0xff]
    %380 = vmatprep.subr.mxu0 0.0
    %381 = vmatpush1.msra.mxu0 %v196
    %382 = vmatprep.subr.mxu0 0.0
    %383 = vmatpush1.msra.mxu0 %v197
    %384 = vmatprep.subr.mxu0 0.0
    %385 = vmatpush1.msra.mxu0 %v198
    %386 = vmatprep.subr.mxu0 0.0
    %387 = vmatpush1.msra.mxu0 %v199
    %388 = vmatprep.subr.mxu0 0.0
    %389 = vmatpush1.msra.mxu0 %v200
    %390 = vmatprep.subr.mxu0 0.0
    %391 = vmatpush1.msra.mxu0 %v201
    %392 = vmatprep.subr.mxu0 0.0
    %393 = vmatpush1.msra.mxu0 %v202
    %394 = vmatprep.subr.mxu0 0.0
    %395 = vmatpush1.msra.mxu0 %v203
    %396 = vmatprep.subr.mxu0 0.0
    %397 = vmatpush1.msra.mxu0 %v204
    %398 = vmatprep.subr.mxu0 0.0
    %399 = vmatpush1.msra.mxu0 %v205
    %400 = vmatprep.subr.mxu0 0.0
    %401 = vmatpush1.msra.mxu0 %v206
    %402 = vmatprep.subr.mxu0 0.0
    %403 = vmatpush1.msra.mxu0 %v207
    %404 = vmatprep.subr.mxu0 0.0
    %405 = vmatpush1.msra.mxu0 %v208
    %406 = vmatprep.subr.mxu0 0.0
    %407 = vmatpush1.msra.mxu0 %v209
    %408 = vmatprep.subr.mxu0 0.0
    %409 = vmatpush1.msra.mxu0 %v210
    %410 = vmatprep.subr.mxu0 0.0
    %411 = vmatpush1.msra.mxu0 %v211
    %412 = vmatprep.subr.mxu0 0.0
    %413 = vmatpush1.msra.mxu0 0.0
    %414 = vmatprep.subr.mxu0 0.0
    %415 = vmatpush1.msra.mxu0 0.0
    %416 = vmatprep.subr.mxu0 0.0
    %417 = vmatpush1.msra.mxu0 0.0
    %418 = vmatprep.subr.mxu0 0.0
    %419 = vmatpush1.msra.mxu0 0.0
    %420 = vmatprep.subr.mxu0 0.0
    %421 = vmatpush1.msra.mxu0 0.0
    %422 = vmatprep.subr.mxu0 0.0
    %423 = vmatpush1.msra.mxu0 0.0
    %424 = vmatprep.subr.mxu0 0.0
    %425 = vmatpush1.msra.mxu0 0.0
    %426 = vmatprep.subr.mxu0 0.0
    %427 = vmatpush1.msra.mxu0 0.0
    %428 = vmatprep.subr.mxu0 0.0
    %429 = vmatpush1.msra.mxu0 0.0
    %430 = vmatprep.subr.mxu0 0.0
    %431 = vmatpush1.msra.mxu0 0.0
    %432 = vmatprep.subr.mxu0 0.0
    %433 = vmatpush1.msra.mxu0 0.0
    %434 = vmatprep.subr.mxu0 0.0
    %435 = vmatpush1.msra.mxu0 0.0
    %436 = vmatprep.subr.mxu0 0.0
    %437 = vmatpush1.msra.mxu0 0.0
    %438 = vmatprep.subr.mxu0 0.0
    %439 = vmatpush1.msra.mxu0 0.0
    %440 = vmatprep.subr.mxu0 0.0
    %441 = vmatpush1.msra.mxu0 0.0
    %442 = vmatprep.subr.mxu0 0.0
    %443 = vmatpush1.msra.mxu0 0.0
    %444 = vmatprep.mubr.f32.mxu0 0.0
    %445 = vmatmul.mubr.f32.gmra.mrb[0].mxu0 %v378
    %v446 = vpop.f32.mrb[0].mxu0
    %v447 = vadd.f32 0.0, %v446
    %v448 = vpop.f32.mrb[0].mxu0
    %449 = vdwg.mxu0
    %v450 = vadd.f32 %v379, %v447
    %v451 = vtanh.pop %v450
    %vm452 = vcmp.gt.s32.totalorder %v212, 2
    %v453 = vsel %vm452, 1, 0
    %454 = vset.pattern.permute.xlu0 0
    %455 = vperm.xlu0 %454, %v453
    %v456 = vpop.permute.xlu0 %455
    %vm457 = vcmp.eq.s32.totalorder %v456, 1
    %v458 = vsel %vm457, %v451, 0.0
    %s459 = scalar_lea.vmem [#allocation3], 16
    %460 = vst [vmem:[%s459] sm:$0xff] %v458
    %v461 = vsel %vm457, %v451, %v378
    %v462 = vld [vmem:[#allocation2 + $0x18] sm:$0xff]
    %463 = vmatprep.subr.mxu0 0.0
    %464 = vmatpush1.msra.mxu0 %v196
    %465 = vmatprep.subr.mxu0 0.0
    %466 = vmatpush1.msra.mxu0 %v197
    %467 = vmatprep.subr.mxu0 0.0
    %468 = vmatpush1.msra.mxu0 %v198
    %469 = vmatprep.subr.mxu0 0.0
    %470 = vmatpush1.msra.mxu0 %v199
    %471 = vmatprep.subr.mxu0 0.0
    %472 = vmatpush1.msra.mxu0 %v200
    %473 = vmatprep.subr.mxu0 0.0
    %474 = vmatpush1.msra.mxu0 %v201
    %475 = vmatprep.subr.mxu0 0.0
    %476 = vmatpush1.msra.mxu0 %v202
    %477 = vmatprep.subr.mxu0 0.0
    %478 = vmatpush1.msra.mxu0 %v203
    %479 = vmatprep.subr.mxu0 0.0
    %480 = vmatpush1.msra.mxu0 %v204
    %481 = vmatprep.subr.mxu0 0.0
    %482 = vmatpush1.msra.mxu0 %v205
    %483 = vmatprep.subr.mxu0 0.0
    %484 = vmatpush1.msra.mxu0 %v206
    %485 = vmatprep.subr.mxu0 0.0
    %486 = vmatpush1.msra.mxu0 %v207
    %487 = vmatprep.subr.mxu0 0.0
    %488 = vmatpush1.msra.mxu0 %v208
    %489 = vmatprep.subr.mxu0 0.0
    %490 = vmatpush1.msra.mxu0 %v209
    %491 = vmatprep.subr.mxu0 0.0
    %492 = vmatpush1.msra.mxu0 %v210
    %493 = vmatprep.subr.mxu0 0.0
    %494 = vmatpush1.msra.mxu0 %v211
    %495 = vmatprep.subr.mxu0 0.0
    %496 = vmatpush1.msra.mxu0 0.0
    %497 = vmatprep.subr.mxu0 0.0
    %498 = vmatpush1.msra.mxu0 0.0
    %499 = vmatprep.subr.mxu0 0.0
    %500 = vmatpush1.msra.mxu0 0.0
    %501 = vmatprep.subr.mxu0 0.0
    %502 = vmatpush1.msra.mxu0 0.0
    %503 = vmatprep.subr.mxu0 0.0
    %504 = vmatpush1.msra.mxu0 0.0
    %505 = vmatprep.subr.mxu0 0.0
    %506 = vmatpush1.msra.mxu0 0.0
    %507 = vmatprep.subr.mxu0 0.0
    %508 = vmatpush1.msra.mxu0 0.0
    %509 = vmatprep.subr.mxu0 0.0
    %510 = vmatpush1.msra.mxu0 0.0
    %511 = vmatprep.subr.mxu0 0.0
    %512 = vmatpush1.msra.mxu0 0.0
    %513 = vmatprep.subr.mxu0 0.0
    %514 = vmatpush1.msra.mxu0 0.0
    %515 = vmatprep.subr.mxu0 0.0
    %516 = vmatpush1.msra.mxu0 0.0
    %517 = vmatprep.subr.mxu0 0.0
    %518 = vmatpush1.msra.mxu0 0.0
    %519 = vmatprep.subr.mxu0 0.0
    %520 = vmatpush1.msra.mxu0 0.0
    %521 = vmatprep.subr.mxu0 0.0
    %522 = vmatpush1.msra.mxu0 0.0
    %523 = vmatprep.subr.mxu0 0.0
    %524 = vmatpush1.msra.mxu0 0.0
    %525 = vmatprep.subr.mxu0 0.0
    %526 = vmatpush1.msra.mxu0 0.0
    %527 = vmatprep.mubr.f32.mxu0 0.0
    %528 = vmatmul.mubr.f32.gmra.mrb[0].mxu0 %v461
    %v529 = vpop.f32.mrb[0].mxu0
    %v530 = vadd.f32 0.0, %v529
    %v531 = vpop.f32.mrb[0].mxu0
    %532 = vdwg.mxu0
    %v533 = vadd.f32 %v462, %v530
    %v534 = vtanh.pop %v533
    %vm535 = vcmp.gt.s32.totalorder %v212, 3
    %v536 = vsel %vm535, 1, 0
    %537 = vset.pattern.permute.xlu0 0
    %538 = vperm.xlu0 %537, %v536
    %v539 = vpop.permute.xlu0 %538
    %vm540 = vcmp.eq.s32.totalorder %v539, 1
    %v541 = vsel %vm540, %v534, 0.0
    %s542 = scalar_lea.vmem [#allocation3], 24
    %543 = vst [vmem:[%s542] sm:$0xff] %v541
    %v544 = vsel %vm540, %v534, %v461
    %v545 = vld [vmem:[#allocation2 + $0x20] sm:$0xff]
    %546 = vmatprep.subr.mxu0 0.0
    %547 = vmatpush1.msra.mxu0 %v196
    %548 = vmatprep.subr.mxu0 0.0
    %549 = vmatpush1.msra.mxu0 %v197
    %550 = vmatprep.subr.mxu0 0.0
    %551 = vmatpush1.msra.mxu0 %v198
    %552 = vmatprep.subr.mxu0 0.0
    %553 = vmatpush1.msra.mxu0 %v199
    %554 = vmatprep.subr.mxu0 0.0
    %555 = vmatpush1.msra.mxu0 %v200
    %556 = vmatprep.subr.mxu0 0.0
    %557 = vmatpush1.msra.mxu0 %v201
    %558 = vmatprep.subr.mxu0 0.0
    %559 = vmatpush1.msra.mxu0 %v202
    %560 = vmatprep.subr.mxu0 0.0
    %561 = vmatpush1.msra.mxu0 %v203
    %562 = vmatprep.subr.mxu0 0.0
    %563 = vmatpush1.msra.mxu0 %v204
    %564 = vmatprep.subr.mxu0 0.0
    %565 = vmatpush1.msra.mxu0 %v205
    %566 = vmatprep.subr.mxu0 0.0
    %567 = vmatpush1.msra.mxu0 %v206
    %568 = vmatprep.subr.mxu0 0.0
    %569 = vmatpush1.msra.mxu0 %v207
    %570 = vmatprep.subr.mxu0 0.0
    %571 = vmatpush1.msra.mxu0 %v208
    %572 = vmatprep.subr.mxu0 0.0
    %573 = vmatpush1.msra.mxu0 %v209
    %574 = vmatprep.subr.mxu0 0.0
    %575 = vmatpush1.msra.mxu0 %v210
    %576 = vmatprep.subr.mxu0 0.0
    %577 = vmatpush1.msra.mxu0 %v211
    %578 = vmatprep.subr.mxu0 0.0
    %579 = vmatpush1.msra.mxu0 0.0
    %580 = vmatprep.subr.mxu0 0.0
    %581 = vmatpush1.msra.mxu0 0.0
    %582 = vmatprep.subr.mxu0 0.0
    %583 = vmatpush1.msra.mxu0 0.0
    %584 = vmatprep.subr.mxu0 0.0
    %585 = vmatpush1.msra.mxu0 0.0
    %586 = vmatprep.subr.mxu0 0.0
    %587 = vmatpush1.msra.mxu0 0.0
    %588 = vmatprep.subr.mxu0 0.0
    %589 = vmatpush1.msra.mxu0 0.0
    %590 = vmatprep.subr.mxu0 0.0
    %591 = vmatpush1.msra.mxu0 0.0
    %592 = vmatprep.subr.mxu0 0.0
    %593 = vmatpush1.msra.mxu0 0.0
    %594 = vmatprep.subr.mxu0 0.0
    %595 = vmatpush1.msra.mxu0 0.0
    %596 = vmatprep.subr.mxu0 0.0
    %597 = vmatpush1.msra.mxu0 0.0
    %598 = vmatprep.subr.mxu0 0.0
    %599 = vmatpush1.msra.mxu0 0.0
    %600 = vmatprep.subr.mxu0 0.0
    %601 = vmatpush1.msra.mxu0 0.0
    %602 = vmatprep.subr.mxu0 0.0
    %603 = vmatpush1.msra.mxu0 0.0
    %604 = vmatprep.subr.mxu0 0.0
    %605 = vmatpush1.msra.mxu0 0.0
    %606 = vmatprep.subr.mxu0 0.0
    %607 = vmatpush1.msra.mxu0 0.0
    %608 = vmatprep.subr.mxu0 0.0
    %609 = vmatpush1.msra.mxu0 0.0
    %610 = vmatprep.mubr.f32.mxu0 0.0
    %611 = vmatmul.mubr.f32.gmra.mrb[0].mxu0 %v544
    %v612 = vpop.f32.mrb[0].mxu0
    %v613 = vadd.f32 0.0, %v612
    %v614 = vpop.f32.mrb[0].mxu0
    %615 = vdwg.mxu0
    %v616 = vadd.f32 %v545, %v613
    %v617 = vtanh.pop %v616
    %vm618 = vcmp.gt.s32.totalorder %v212, 4
    %v619 = vsel %vm618, 1, 0
    %620 = vset.pattern.permute.xlu0 0
    %621 = vperm.xlu0 %620, %v619
    %v622 = vpop.permute.xlu0 %621
    %vm623 = vcmp.eq.s32.totalorder %v622, 1
    %v624 = vsel %vm623, %v617, 0.0
    %s625 = scalar_lea.vmem [#allocation3], 32
    %626 = vst [vmem:[%s625] sm:$0xff] %v624
    %v627 = vsel %vm623, %v617, %v544
    %v628 = vld [vmem:[#allocation2 + $0x28] sm:$0xff]
    %629 = vmatprep.subr.mxu0 0.0
    %630 = vmatpush1.msra.mxu0 %v196
    %631 = vmatprep.subr.mxu0 0.0
    %632 = vmatpush1.msra.mxu0 %v197
    %633 = vmatprep.subr.mxu0 0.0
    %634 = vmatpush1.msra.mxu0 %v198
    %635 = vmatprep.subr.mxu0 0.0
    %636 = vmatpush1.msra.mxu0 %v199
    %637 = vmatprep.subr.mxu0 0.0
    %638 = vmatpush1.msra.mxu0 %v200
    %639 = vmatprep.subr.mxu0 0.0
    %640 = vmatpush1.msra.mxu0 %v201
    %641 = vmatprep.subr.mxu0 0.0
    %642 = vmatpush1.msra.mxu0 %v202
    %643 = vmatprep.subr.mxu0 0.0
    %644 = vmatpush1.msra.mxu0 %v203
    %645 = vmatprep.subr.mxu0 0.0
    %646 = vmatpush1.msra.mxu0 %v204
    %647 = vmatprep.subr.mxu0 0.0
    %648 = vmatpush1.msra.mxu0 %v205
    %649 = vmatprep.subr.mxu0 0.0
    %650 = vmatpush1.msra.mxu0 %v206
    %651 = vmatprep.subr.mxu0 0.0
    %652 = vmatpush1.msra.mxu0 %v207
    %653 = vmatprep.subr.mxu0 0.0
    %654 = vmatpush1.msra.mxu0 %v208
    %655 = vmatprep.subr.mxu0 0.0
    %656 = vmatpush1.msra.mxu0 %v209
    %657 = vmatprep.subr.mxu0 0.0
    %658 = vmatpush1.msra.mxu0 %v210
    %659 = vmatprep.subr.mxu0 0.0
    %660 = vmatpush1.msra.mxu0 %v211
    %661 = vmatprep.subr.mxu0 0.0
    %662 = vmatpush1.msra.mxu0 0.0
    %663 = vmatprep.subr.mxu0 0.0
    %664 = vmatpush1.msra.mxu0 0.0
    %665 = vmatprep.subr.mxu0 0.0
    %666 = vmatpush1.msra.mxu0 0.0
    %667 = vmatprep.subr.mxu0 0.0
    %668 = vmatpush1.msra.mxu0 0.0
    %669 = vmatprep.subr.mxu0 0.0
    %670 = vmatpush1.msra.mxu0 0.0
    %671 = vmatprep.subr.mxu0 0.0
    %672 = vmatpush1.msra.mxu0 0.0
    %673 = vmatprep.subr.mxu0 0.0
    %674 = vmatpush1.msra.mxu0 0.0
    %675 = vmatprep.subr.mxu0 0.0
    %676 = vmatpush1.msra.mxu0 0.0
    %677 = vmatprep.subr.mxu0 0.0
    %678 = vmatpush1.msra.mxu0 0.0
    %679 = vmatprep.subr.mxu0 0.0
    %680 = vmatpush1.msra.mxu0 0.0
    %681 = vmatprep.subr.mxu0 0.0
    %682 = vmatpush1.msra.mxu0 0.0
    %683 = vmatprep.subr.mxu0 0.0
    %684 = vmatpush1.msra.mxu0 0.0
    %685 = vmatprep.subr.mxu0 0.0
    %686 = vmatpush1.msra.mxu0 0.0
    %687 = vmatprep.subr.mxu0 0.0
    %688 = vmatpush1.msra.mxu0 0.0
    %689 = vmatprep.subr.mxu0 0.0
    %690 = vmatpush1.msra.mxu0 0.0
    %691 = vmatprep.subr.mxu0 0.0
    %692 = vmatpush1.msra.mxu0 0.0
    %693 = vmatprep.mubr.f32.mxu0 0.0
    %694 = vmatmul.mubr.f32.gmra.mrb[0].mxu0 %v627
    %v695 = vpop.f32.mrb[0].mxu0
    %v696 = vadd.f32 0.0, %v695
    %v697 = vpop.f32.mrb[0].mxu0
    %698 = vdwg.mxu0
    %v699 = vadd.f32 %v628, %v696
    %v700 = vtanh.pop %v699
    %vm701 = vcmp.gt.s32.totalorder %v212, 5
    %v702 = vsel %vm701, 1, 0
    %703 = vset.pattern.permute.xlu0 0
    %704 = vperm.xlu0 %703, %v702
    %v705 = vpop.permute.xlu0 %704
    %vm706 = vcmp.eq.s32.totalorder %v705, 1
    %v707 = vsel %vm706, %v700, 0.0
    %s708 = scalar_lea.vmem [#allocation3], 40
    %709 = vst [vmem:[%s708] sm:$0xff] %v707
    %v710 = vsel %vm706, %v700, %v627
    %v711 = vld [vmem:[#allocation2 + $0x30] sm:$0xff]
    %712 = vmatprep.subr.mxu0 0.0
    %713 = vmatpush1.msra.mxu0 %v196
    %714 = vmatprep.subr.mxu0 0.0
    %715 = vmatpush1.msra.mxu0 %v197
    %716 = vmatprep.subr.mxu0 0.0
    %717 = vmatpush1.msra.mxu0 %v198
    %718 = vmatprep.subr.mxu0 0.0
    %719 = vmatpush1.msra.mxu0 %v199
    %720 = vmatprep.subr.mxu0 0.0
    %721 = vmatpush1.msra.mxu0 %v200
    %722 = vmatprep.subr.mxu0 0.0
    %723 = vmatpush1.msra.mxu0 %v201
    %724 = vmatprep.subr.mxu0 0.0
    %725 = vmatpush1.msra.mxu0 %v202
    %726 = vmatprep.subr.mxu0 0.0
    %727 = vmatpush1.msra.mxu0 %v203
    %728 = vmatprep.subr.mxu0 0.0
    %729 = vmatpush1.msra.mxu0 %v204
    %730 = vmatprep.subr.mxu0 0.0
    %731 = vmatpush1.msra.mxu0 %v205
    %732 = vmatprep.subr.mxu0 0.0
    %733 = vmatpush1.msra.mxu0 %v206
    %734 = vmatprep.subr.mxu0 0.0
    %735 = vmatpush1.msra.mxu0 %v207
    %736 = vmatprep.subr.mxu0 0.0
    %737 = vmatpush1.msra.mxu0 %v208
    %738 = vmatprep.subr.mxu0 0.0
    %739 = vmatpush1.msra.mxu0 %v209
    %740 = vmatprep.subr.mxu0 0.0
    %741 = vmatpush1.msra.mxu0 %v210
    %742 = vmatprep.subr.mxu0 0.0
    %743 = vmatpush1.msra.mxu0 %v211
    %744 = vmatprep.subr.mxu0 0.0
    %745 = vmatpush1.msra.mxu0 0.0
    %746 = vmatprep.subr.mxu0 0.0
    %747 = vmatpush1.msra.mxu0 0.0
    %748 = vmatprep.subr.mxu0 0.0
    %749 = vmatpush1.msra.mxu0 0.0
    %750 = vmatprep.subr.mxu0 0.0
    %751 = vmatpush1.msra.mxu0 0.0
    %752 = vmatprep.subr.mxu0 0.0
    %753 = vmatpush1.msra.mxu0 0.0
    %754 = vmatprep.subr.mxu0 0.0
    %755 = vmatpush1.msra.mxu0 0.0
    %756 = vmatprep.subr.mxu0 0.0
    %757 = vmatpush1.msra.mxu0 0.0
    %758 = vmatprep.subr.mxu0 0.0
    %759 = vmatpush1.msra.mxu0 0.0
    %760 = vmatprep.subr.mxu0 0.0
    %761 = vmatpush1.msra.mxu0 0.0
    %762 = vmatprep.subr.mxu0 0.0
    %763 = vmatpush1.msra.mxu0 0.0
    %764 = vmatprep.subr.mxu0 0.0
    %765 = vmatpush1.msra.mxu0 0.0
    %766 = vmatprep.subr.mxu0 0.0
    %767 = vmatpush1.msra.mxu0 0.0
    %768 = vmatprep.subr.mxu0 0.0
    %769 = vmatpush1.msra.mxu0 0.0
    %770 = vmatprep.subr.mxu0 0.0
    %771 = vmatpush1.msra.mxu0 0.0
    %772 = vmatprep.subr.mxu0 0.0
    %773 = vmatpush1.msra.mxu0 0.0
    %774 = vmatprep.subr.mxu0 0.0
    %775 = vmatpush1.msra.mxu0 0.0
    %776 = vmatprep.mubr.f32.mxu0 0.0
    %777 = vmatmul.mubr.f32.gmra.mrb[0].mxu0 %v710
    %v778 = vpop.f32.mrb[0].mxu0
    %v779 = vadd.f32 0.0, %v778
    %v780 = vpop.f32.mrb[0].mxu0
    %781 = vdwg.mxu0
    %v782 = vadd.f32 %v711, %v779
    %v783 = vtanh.pop %v782
    %vm784 = vcmp.gt.s32.totalorder %v212, 6
    %v785 = vsel %vm784, 1, 0
    %786 = vset.pattern.permute.xlu0 0
    %787 = vperm.xlu0 %786, %v785
    %v788 = vpop.permute.xlu0 %787
    %vm789 = vcmp.eq.s32.totalorder %v788, 1
    %v790 = vsel %vm789, %v783, 0.0
    %s791 = scalar_lea.vmem [#allocation3], 48
    %792 = vst [vmem:[%s791] sm:$0xff] %v790
    %v793 = vsel %vm789, %v783, %v710
    %v794 = vld [vmem:[#allocation2 + $0x38] sm:$0xff]
    %795 = vmatprep.subr.mxu0 0.0
    %796 = vmatpush1.msra.mxu0 %v196
    %797 = vmatprep.subr.mxu0 0.0
    %798 = vmatpush1.msra.mxu0 %v197
    %799 = vmatprep.subr.mxu0 0.0
    %800 = vmatpush1.msra.mxu0 %v198
    %801 = vmatprep.subr.mxu0 0.0
    %802 = vmatpush1.msra.mxu0 %v199
    %803 = vmatprep.subr.mxu0 0.0
    %804 = vmatpush1.msra.mxu0 %v200
    %805 = vmatprep.subr.mxu0 0.0
    %806 = vmatpush1.msra.mxu0 %v201
    %807 = vmatprep.subr.mxu0 0.0
    %808 = vmatpush1.msra.mxu0 %v202
    %809 = vmatprep.subr.mxu0 0.0
    %810 = vmatpush1.msra.mxu0 %v203
    %811 = vmatprep.subr.mxu0 0.0
    %812 = vmatpush1.msra.mxu0 %v204
    %813 = vmatprep.subr.mxu0 0.0
    %814 = vmatpush1.msra.mxu0 %v205
    %815 = vmatprep.subr.mxu0 0.0
    %816 = vmatpush1.msra.mxu0 %v206
    %817 = vmatprep.subr.mxu0 0.0
    %818 = vmatpush1.msra.mxu0 %v207
    %819 = vmatprep.subr.mxu0 0.0
    %820 = vmatpush1.msra.mxu0 %v208
    %821 = vmatprep.subr.mxu0 0.0
    %822 = vmatpush1.msra.mxu0 %v209
    %823 = vmatprep.subr.mxu0 0.0
    %824 = vmatpush1.msra.mxu0 %v210
    %825 = vmatprep.subr.mxu0 0.0
    %826 = vmatpush1.msra.mxu0 %v211
    %827 = vmatprep.subr.mxu0 0.0
    %828 = vmatpush1.msra.mxu0 0.0
    %829 = vmatprep.subr.mxu0 0.0
    %830 = vmatpush1.msra.mxu0 0.0
    %831 = vmatprep.subr.mxu0 0.0
    %832 = vmatpush1.msra.mxu0 0.0
    %833 = vmatprep.subr.mxu0 0.0
    %834 = vmatpush1.msra.mxu0 0.0
    %835 = vmatprep.subr.mxu0 0.0
    %836 = vmatpush1.msra.mxu0 0.0
    %837 = vmatprep.subr.mxu0 0.0
    %838 = vmatpush1.msra.mxu0 0.0
    %839 = vmatprep.subr.mxu0 0.0
    %840 = vmatpush1.msra.mxu0 0.0
    %841 = vmatprep.subr.mxu0 0.0
    %842 = vmatpush1.msra.mxu0 0.0
    %843 = vmatprep.subr.mxu0 0.0
    %844 = vmatpush1.msra.mxu0 0.0
    %845 = vmatprep.subr.mxu0 0.0
    %846 = vmatpush1.msra.mxu0 0.0
    %847 = vmatprep.subr.mxu0 0.0
    %848 = vmatpush1.msra.mxu0 0.0
    %849 = vmatprep.subr.mxu0 0.0
    %850 = vmatpush1.msra.mxu0 0.0
    %851 = vmatprep.subr.mxu0 0.0
    %852 = vmatpush1.msra.mxu0 0.0
    %853 = vmatprep.subr.mxu0 0.0
    %854 = vmatpush1.msra.mxu0 0.0
    %855 = vmatprep.subr.mxu0 0.0
    %856 = vmatpush1.msra.mxu0 0.0
    %857 = vmatprep.subr.mxu0 0.0
    %858 = vmatpush1.msra.mxu0 0.0
    %859 = vmatprep.mubr.f32.mxu0 0.0
    %860 = vmatmul.mubr.f32.gmra.mrb[0].mxu0 %v793
    %v861 = vpop.f32.mrb[0].mxu0
    %v862 = vadd.f32 0.0, %v861
    %v863 = vpop.f32.mrb[0].mxu0
    %864 = vdwg.mxu0
    %v865 = vadd.f32 %v794, %v862
    %v866 = vtanh.pop %v865
    %vm867 = vcmp.gt.s32.totalorder %v212, 7
    %v868 = vsel %vm867, 1, 0
    %869 = vset.pattern.permute.xlu0 0
    %870 = vperm.xlu0 %869, %v868
    %v871 = vpop.permute.xlu0 %870
    %vm872 = vcmp.eq.s32.totalorder %v871, 1
    %v873 = vsel %vm872, %v866, 0.0
    %s874 = scalar_lea.vmem [#allocation3], 56
    %875 = vst [vmem:[%s874] sm:$0xff] %v873
    %v876 = vld [vmem:[#allocation3] sm:$0x3]
    %v879 = vunpack.c.l.s4 1966171168
    %v880 = vunpack.c.0.s8 %v879
    %v881 = vlaneseq
    %v882 = vshrl.u32 %v881, 7
    %v883 = vsub.s32 %v880, %v882
    %v884 = vrot.slane %v876, %v883
    %v885 = vcombine.high %v884, %v884
    %v887 = vunpack.c.l.s4 1966171168
    %v888 = vunpack.c.0.s8 %v887
    %v889 = vlaneseq
    %v890 = vshrl.u32 %v889, 7
    %v891 = vsub.s32 %v888, %v890
    %v892 = vrot.slane %v884, %v891
    %v894 = vunpack.c.l.s4 1966171168
    %v895 = vunpack.c.0.s8 %v894
    %v896 = vlaneseq
    %v897 = vshrl.u32 %v896, 7
    %v898 = vsub.s32 %v895, %v897
    %v899 = vrot.slane %v885, %v898
    %vm902 = vcmask 253952
    %903 = vst.msk [vmem:[#allocation7] sm:$0x1] %vm902, %v892
    %904 = vst.msk [vmem:[#allocation7 + $0x8] sm:$0x1] %vm902, %v899
    %v905 = vld [vmem:[%s376] sm:$0x3]
    %v908 = vunpack.c.l.s4 1966171168
    %v909 = vunpack.c.0.s8 %v908
    %v910 = vlaneseq
    %v911 = vshrl.u32 %v910, 7
    %v912 = vsub.s32 %v909, %v911
    %v913 = vrot.slane %v905, %v912
    %v914 = vcombine.high %v913, %v913
    %v916 = vunpack.c.l.s4 1966171168
    %v917 = vunpack.c.0.s8 %v916
    %v918 = vlaneseq
    %v919 = vshrl.u32 %v918, 7
    %v920 = vsub.s32 %v917, %v919
    %v921 = vrot.slane %v913, %v920
    %v923 = vunpack.c.l.s4 1966171168
    %v924 = vunpack.c.0.s8 %v923
    %v925 = vlaneseq
    %v926 = vshrl.u32 %v925, 7
    %v927 = vsub.s32 %v924, %v926
    %v928 = vrot.slane %v914, %v927
    %931 = vst.msk [vmem:[#allocation7 + $0x1] sm:$0x1] %vm902, %v921
    %932 = vst.msk [vmem:[#allocation7 + $0x9] sm:$0x1] %vm902, %v928
    %v933 = vld [vmem:[%s459] sm:$0x3]
    %v936 = vunpack.c.l.s4 1966171168
    %v937 = vunpack.c.0.s8 %v936
    %v938 = vlaneseq
    %v939 = vshrl.u32 %v938, 7
    %v940 = vsub.s32 %v937, %v939
    %v941 = vrot.slane %v933, %v940
    %v942 = vcombine.high %v941, %v941
    %v944 = vunpack.c.l.s4 1966171168
    %v945 = vunpack.c.0.s8 %v944
    %v946 = vlaneseq
    %v947 = vshrl.u32 %v946, 7
    %v948 = vsub.s32 %v945, %v947
    %v949 = vrot.slane %v941, %v948
    %v951 = vunpack.c.l.s4 1966171168
    %v952 = vunpack.c.0.s8 %v951
    %v953 = vlaneseq
    %v954 = vshrl.u32 %v953, 7
    %v955 = vsub.s32 %v952, %v954
    %v956 = vrot.slane %v942, %v955
    %959 = vst.msk [vmem:[#allocation7 + $0x2] sm:$0x1] %vm902, %v949
    %960 = vst.msk [vmem:[#allocation7 + $0xa] sm:$0x1] %vm902, %v956
    %v961 = vld [vmem:[%s542] sm:$0x3]
    %v964 = vunpack.c.l.s4 1966171168
    %v965 = vunpack.c.0.s8 %v964
    %v966 = vlaneseq
    %v967 = vshrl.u32 %v966, 7
    %v968 = vsub.s32 %v965, %v967
    %v969 = vrot.slane %v961, %v968
    %v970 = vcombine.high %v969, %v969
    %v972 = vunpack.c.l.s4 1966171168
    %v973 = vunpack.c.0.s8 %v972
    %v974 = vlaneseq
    %v975 = vshrl.u32 %v974, 7
    %v976 = vsub.s32 %v973, %v975
    %v977 = vrot.slane %v969, %v976
    %v979 = vunpack.c.l.s4 1966171168
    %v980 = vunpack.c.0.s8 %v979
    %v981 = vlaneseq
    %v982 = vshrl.u32 %v981, 7
    %v983 = vsub.s32 %v980, %v982
    %v984 = vrot.slane %v970, %v983
    %987 = vst.msk [vmem:[#allocation7 + $0x3] sm:$0x1] %vm902, %v977
    %988 = vst.msk [vmem:[#allocation7 + $0xb] sm:$0x1] %vm902, %v984
    %v989 = vld [vmem:[%s625] sm:$0x3]
    %v992 = vunpack.c.l.s4 1966171168
    %v993 = vunpack.c.0.s8 %v992
    %v994 = vlaneseq
    %v995 = vshrl.u32 %v994, 7
    %v996 = vsub.s32 %v993, %v995
    %v997 = vrot.slane %v989, %v996
    %v998 = vcombine.high %v997, %v997
    %v1000 = vunpack.c.l.s4 1966171168
    %v1001 = vunpack.c.0.s8 %v1000
    %v1002 = vlaneseq
    %v1003 = vshrl.u32 %v1002, 7
    %v1004 = vsub.s32 %v1001, %v1003
    %v1005 = vrot.slane %v997, %v1004
    %v1007 = vunpack.c.l.s4 1966171168
    %v1008 = vunpack.c.0.s8 %v1007
    %v1009 = vlaneseq
    %v1010 = vshrl.u32 %v1009, 7
    %v1011 = vsub.s32 %v1008, %v1010
    %v1012 = vrot.slane %v998, %v1011
    %1015 = vst.msk [vmem:[#allocation7 + $0x4] sm:$0x1] %vm902, %v1005
    %1016 = vst.msk [vmem:[#allocation7 + $0xc] sm:$0x1] %vm902, %v1012
    %v1017 = vld [vmem:[%s708] sm:$0x3]
    %v1020 = vunpack.c.l.s4 1966171168
    %v1021 = vunpack.c.0.s8 %v1020
    %v1022 = vlaneseq
    %v1023 = vshrl.u32 %v1022, 7
    %v1024 = vsub.s32 %v1021, %v1023
    %v1025 = vrot.slane %v1017, %v1024
    %v1026 = vcombine.high %v1025, %v1025
    %v1028 = vunpack.c.l.s4 1966171168
    %v1029 = vunpack.c.0.s8 %v1028
    %v1030 = vlaneseq
    %v1031 = vshrl.u32 %v1030, 7
    %v1032 = vsub.s32 %v1029, %v1031
    %v1033 = vrot.slane %v1025, %v1032
    %v1035 = vunpack.c.l.s4 1966171168
    %v1036 = vunpack.c.0.s8 %v1035
    %v1037 = vlaneseq
    %v1038 = vshrl.u32 %v1037, 7
    %v1039 = vsub.s32 %v1036, %v1038
    %v1040 = vrot.slane %v1026, %v1039
    %1043 = vst.msk [vmem:[#allocation7 + $0x5] sm:$0x1] %vm902, %v1033
    %1044 = vst.msk [vmem:[#allocation7 + $0xd] sm:$0x1] %vm902, %v1040
    %v1045 = vld [vmem:[%s791] sm:$0x3]
    %v1048 = vunpack.c.l.s4 1966171168
    %v1049 = vunpack.c.0.s8 %v1048
    %v1050 = vlaneseq
    %v1051 = vshrl.u32 %v1050, 7
    %v1052 = vsub.s32 %v1049, %v1051
    %v1053 = vrot.slane %v1045, %v1052
    %v1054 = vcombine.high %v1053, %v1053
    %v1056 = vunpack.c.l.s4 1966171168
    %v1057 = vunpack.c.0.s8 %v1056
    %v1058 = vlaneseq
    %v1059 = vshrl.u32 %v1058, 7
    %v1060 = vsub.s32 %v1057, %v1059
    %v1061 = vrot.slane %v1053, %v1060
    %v1063 = vunpack.c.l.s4 1966171168
    %v1064 = vunpack.c.0.s8 %v1063
    %v1065 = vlaneseq
    %v1066 = vshrl.u32 %v1065, 7
    %v1067 = vsub.s32 %v1064, %v1066
    %v1068 = vrot.slane %v1054, %v1067
    %1071 = vst.msk [vmem:[#allocation7 + $0x6] sm:$0x1] %vm902, %v1061
    %1072 = vst.msk [vmem:[#allocation7 + $0xe] sm:$0x1] %vm902, %v1068
    %v1073 = vld [vmem:[%s874] sm:$0x3]
    %v1076 = vunpack.c.l.s4 1966171168
    %v1077 = vunpack.c.0.s8 %v1076
    %v1078 = vlaneseq
    %v1079 = vshrl.u32 %v1078, 7
    %v1080 = vsub.s32 %v1077, %v1079
    %v1081 = vrot.slane %v1073, %v1080
    %v1082 = vcombine.high %v1081, %v1081
    %v1084 = vunpack.c.l.s4 1966171168
    %v1085 = vunpack.c.0.s8 %v1084
    %v1086 = vlaneseq
    %v1087 = vshrl.u32 %v1086, 7
    %v1088 = vsub.s32 %v1085, %v1087
    %v1089 = vrot.slane %v1081, %v1088
    %v1091 = vunpack.c.l.s4 1966171168
    %v1092 = vunpack.c.0.s8 %v1091
    %v1093 = vlaneseq
    %v1094 = vshrl.u32 %v1093, 7
    %v1095 = vsub.s32 %v1092, %v1094
    %v1096 = vrot.slane %v1082, %v1095
    %1099 = vst.msk [vmem:[#allocation7 + $0x7] sm:$0x1] %vm902, %v1089
    %1100 = vst.msk [vmem:[#allocation7 + $0xf] sm:$0x1] %vm902, %v1096
    // Predicated region
    $region30: #{tpu_custom_call.1} parent=1 // pred_check
      _
    $region31: #{tpu_custom_call.1} parent=1 // pred_check_branch
      %1102 = sbr.rel (0) target = $region33
    $region32: #{tpu_custom_call.1} parent=1 // pred_region
      %s1104 = ssub.s32 256, 256
      %1105 = vsyncadd [#allocation6], %s1104
      %s1106 = sshll.u32 [#allocation7], 4
      %s1107 = int_to_ptr.vmem [resolvable:$true] %s1106
      %1112 = dma.vmem_to_hbm [thread:$0]  %s1107, 256, %s6, [#allocation6], 128, 128, 8
    $region33: #{tpu_custom_call.1} parent=1 // pred_fallthru
      _
    // Predicated region
    $region34: #{tpu_custom_call.1} parent=1 // pred_check
      _
    $region35: #{tpu_custom_call.1} parent=1 // pred_check_branch
      %1114 = sbr.rel (0) target = $region37
    $region36: #{tpu_custom_call.1} parent=1 // pred_region
      %1115 = dma.done [#allocation6], 256
    $region37: #{tpu_custom_call.1} parent=1 // pred_fallthru
      _
    %1116 = vsyncpa [#allocation5], 1
    %1117 = vsyncpa [#allocation6], 1

</llo_original>
